<compile_context>
chip_gen: v5e
topology: v5e:2x2
jax: 0.10.0
libtpu: 0.0.40
codegen_flags: <defaults>
</compile_context>

<pallas_src>
import functools

import jax
import jax.numpy as jnp
import numpy as np
from jax.experimental import pallas as pl
from jax.experimental.pallas import tpu as pltpu


def _round_up(x, m):
    return (x + m - 1) // m * m


def _attention_kernel(s_ref, enc_ref, w_ref, v_ref, out_ref, *, dd_pad, l_valid):
    # s_ref:   (TB, Dd_p)          decoder states for this batch tile (zero-padded features)
    # enc_ref: (TB, L_p, De_p)     encoder outputs (zero-padded L and features)
    # w_ref:   (Dd_p + De_p, Dd_p) packed [Ws; We] (already transposed vs. PyTorch weight)
    # v_ref:   (1, Dd_p)           scoring vector as a lane row
    # out_ref: (TB, L_p)           softmax attention weights (lane-dense)
    tb, l_p, de_p = enc_ref.shape
    dd_p = s_ref.shape[1]

    ws = w_ref[:dd_pad, :]                      # (Dd_p, Dd_p)  static slice -> free view
    we = w_ref[dd_pad:, :]                      # (De_p, Dd_p)

    # Hoisted decoder-state projection: once per batch row, not once per (row, L).
    s_proj = jnp.dot(s_ref[...], ws, preferred_element_type=jnp.float32)   # (TB, Dd_p)

    # Encoder projection as a single flattened, MXU-dense matmul (layout-preserving reshape).
    enc_flat = enc_ref[...].reshape(tb * l_p, de_p)
    e_enc = jnp.dot(enc_flat, we, preferred_element_type=jnp.float32)      # (TB*L_p, Dd_p)
    e_enc = e_enc.reshape(tb, l_p, dd_p)

    E = jnp.tanh(e_enc + s_proj[:, None, :])                               # (TB, L_p, Dd_p)

    # Scoring vector via VPU multiply + lane reduce — avoids an N=1 MXU matmul.
    score = jnp.sum(E * v_ref[...][None, :, :], axis=-1)                   # (TB, L_p)

    # Mask out padded sequence positions before the softmax.
    if l_valid < l_p:
        lane = jax.lax.broadcasted_iota(jnp.int32, (tb, l_p), 1)
        score = jnp.where(lane < l_valid, score, -jnp.inf)

    # Numerically stable softmax along the sequence (lane) axis — no transpose needed.
    m = jnp.max(score, axis=-1, keepdims=True)
    p = jnp.exp(score - m)
    out_ref[...] = (p / jnp.sum(p, axis=-1, keepdims=True)).astype(out_ref.dtype)


def _pick_block_b(B, L_p, De_p, Dd_p, vmem_budget_bytes=24 << 20):
    """Pick a batch tile: multiple of 8, fits the VMEM budget, >=2 grid steps if possible."""
    b8 = _round_up(B, 8)
    # Constant-index packed weight block (conservatively assume double-buffered).
    w_bytes = 2 * (Dd_p + De_p) * Dd_p * 4
    budget = max(1 << 20, vmem_budget_bytes - w_bytes)
    # f32 bytes per batch row per step:
    #   enc input (double-buffered) + e_enc/E intermediates + score/softmax/out buffers.
    per_row = (2 * L_p * De_p + 2 * L_p * Dd_p + 4 * L_p) * 4
    fit = max(8, (budget // per_row) // 8 * 8)
    tb = min(128, fit, b8)
    # Prefer at least 2 grid steps when there is enough batch (v7x has 2 TensorCores;
    # the "parallel" batch axis shards grid steps across them — a no-op on v5e/v6e).
    if b8 > 8 and b8 <= tb:
        tb = max(8, _round_up(b8 // 2, 8))
    return tb


def attention_pallas(s, enc_output, W_hs_T, v_col):
    """s: (B, Dd), enc_output: (B, L, De), W_hs_T: (Dd+De, Dd), v_col: (Dd, 1)."""
    B, Dd = s.shape
    _, L, De = enc_output.shape

    # Lane-align all feature / sequence dims.
    Dd_p = _round_up(Dd, 128)
    De_p = _round_up(De, 128)
    L_p = _round_up(L, 128)

    TB = _pick_block_b(B, L_p, De_p, Dd_p)
    B_p = _round_up(B, TB)
    grid = (B_p // TB,)

    # Zero-pad activations (padded rows/positions are masked or sliced away).
    s_p = jnp.pad(s.astype(jnp.float32), ((0, B_p - B), (0, Dd_p - Dd)))
    enc_p = jnp.pad(enc_output.astype(jnp.float32),
                    ((0, B_p - B), (0, L_p - L), (0, De_p - De)))

    # Pack the two halves of W_hs (acting on s and on enc_output) into one block.
    Ws_p = jnp.pad(W_hs_T[:Dd, :].astype(jnp.float32), ((0, Dd_p - Dd), (0, Dd_p - Dd)))
    We_p = jnp.pad(W_hs_T[Dd:, :].astype(jnp.float32), ((0, De_p - De), (0, Dd_p - Dd)))
    W_pack = jnp.concatenate([Ws_p, We_p], axis=0)                  # (Dd_p + De_p, Dd_p)
    v_row = jnp.pad(v_col[:, 0].astype(jnp.float32)[None, :], ((0, 0), (0, Dd_p - Dd)))

    kernel = functools.partial(_attention_kernel, dd_pad=Dd_p, l_valid=L)

    out = pl.pallas_call(
        kernel,
        out_shape=jax.ShapeDtypeStruct((B_p, L_p), jnp.float32),
        grid=grid,
        in_specs=[
            pl.BlockSpec((TB, Dd_p), lambda b: (b, 0)),
            pl.BlockSpec((TB, L_p, De_p), lambda b: (b, 0, 0)),
            pl.BlockSpec((Dd_p + De_p, Dd_p), lambda b: (0, 0)),
            pl.BlockSpec((1, Dd_p), lambda b: (0, 0)),
        ],
        out_specs=pl.BlockSpec((TB, L_p), lambda b: (b, 0)),
        compiler_params=pltpu.CompilerParams(
            dimension_semantics=("parallel",),
            vmem_limit_bytes=48 << 20),
    )(s_p, enc_p, W_pack, v_row)

    return out[:B, :L]


def attention_ref(s, enc_output, W_hs_T, v_col):
    B, L, De = enc_output.shape
    s_rep = jnp.broadcast_to(s[:, None, :], (B, L, s.shape[1]))
    x = jnp.concatenate([s_rep, enc_output], axis=2)          # (B, L, Dd+De)
    E = jnp.tanh(jnp.einsum("bld,do->blo", x, W_hs_T))
    att = jnp.einsum("blo,ok->blk", E, v_col)[..., 0]          # (B, L)
    return jax.nn.softmax(att, axis=1)


if __name__ == "__main__":
    # Small shapes consistent with the module: enc_hid_dim=16, dec_hid_dim=32
    B, L = 2, 8
    enc_hid_dim, dec_hid_dim = 16, 32
    De = 2 * enc_hid_dim            # 32
    Dd = dec_hid_dim                # 32

    key = jax.random.PRNGKey(0)
    k1, k2, k3, k4 = jax.random.split(key, 4)

    s = jax.random.normal(k1, (B, Dd), dtype=jnp.float32)
    enc_output = jax.random.normal(k2, (B, L, De), dtype=jnp.float32)

    # Deterministic parameter init (nn.Linear-style uniform, no bias).
    lim_w = 1.0 / np.sqrt(Dd + De)
    W_hs_T = jax.random.uniform(k3, (Dd + De, Dd), minval=-lim_w, maxval=lim_w,
                                dtype=jnp.float32)   # transposed PyTorch weight
    lim_v = 1.0 / np.sqrt(Dd)
    v_col = jax.random.uniform(k4, (Dd, 1), minval=-lim_v, maxval=lim_v,
                               dtype=jnp.float32)

    out = attention_pallas(s, enc_output, W_hs_T, v_col)
    out = jax.block_until_ready(out)

    expected = attention_ref(s, enc_output, W_hs_T, v_col)
    np.testing.assert_allclose(np.asarray(out), np.asarray(expected),
                               rtol=1e-5, atol=1e-5)
    assert out.shape == (B, L)
    print("KERNEL_OK")
</pallas_src>

<mosaic_0001>
module attributes {stable_mosaic.version = 11 : i64} {
  func.func @_attention_kernel(%arg0: i32, %arg1: memref<8x128xf32, #tpu.memory_space<vmem>>, %arg2: memref<8x128x128xf32, #tpu.memory_space<vmem>>, %arg3: memref<256x128xf32, #tpu.memory_space<vmem>>, %arg4: memref<1x128xf32, #tpu.memory_space<vmem>>, %arg5: memref<8x128xf32, #tpu.memory_space<vmem>>) attributes {dimension_semantics = [#tpu.dimension_semantics<parallel>], iteration_bounds = array<i64: 1>, scalar_prefetch = 0 : i64, scratch_operands = 0 : i64, tpu.core_type = #tpu.core_type<tc>, window_params = [{transform_indices = @transform_0, window_bounds = array<i64: 8, 128>}, {transform_indices = @transform_1, window_bounds = array<i64: 8, 128, 128>}, {pipeline_mode = #tpu.pipeline_mode<synchronous>, transform_indices = @transform_2, window_bounds = array<i64: 256, 128>}, {pipeline_mode = #tpu.pipeline_mode<synchronous>, transform_indices = @transform_3, window_bounds = array<i64: 1, 128>}, {transform_indices = @transform_4, window_bounds = array<i64: 8, 128>}]} {
    %c0 = arith.constant 0 : index
    %c0_0 = arith.constant 0 : index
    %0 = vector.load %arg3[%c0, %c0_0] : memref<256x128xf32, #tpu.memory_space<vmem>>, vector<128x128xf32>
    %c128 = arith.constant 128 : index
    %c0_1 = arith.constant 0 : index
    %1 = vector.load %arg3[%c128, %c0_1] : memref<256x128xf32, #tpu.memory_space<vmem>>, vector<128x128xf32>
    %c0_2 = arith.constant 0 : index
    %c0_3 = arith.constant 0 : index
    %2 = vector.load %arg1[%c0_2, %c0_3] : memref<8x128xf32, #tpu.memory_space<vmem>>, vector<8x128xf32>
    %cst = arith.constant dense<0.000000e+00> : vector<8x128xf32>
    %3 = tpu.matmul %2, %0, %cst {dimension_numbers = #tpu.dot_dimension_numbers<[1], [0], [0], [1], [0, 0, 1, 1], [], []>} : vector<8x128xf32>, vector<128x128xf32>, vector<8x128xf32> -> vector<8x128xf32>
    %c0_4 = arith.constant 0 : index
    %c0_5 = arith.constant 0 : index
    %c0_6 = arith.constant 0 : index
    %4 = vector.load %arg2[%c0_4, %c0_5, %c0_6] : memref<8x128x128xf32, #tpu.memory_space<vmem>>, vector<8x128x128xf32>
    %5 = vector.shape_cast %4 : vector<8x128x128xf32> to vector<1024x128xf32>
    %cst_7 = arith.constant dense<0.000000e+00> : vector<1024x128xf32>
    %6 = tpu.matmul %5, %1, %cst_7 {dimension_numbers = #tpu.dot_dimension_numbers<[1], [0], [0], [1], [0, 0, 1, 1], [], []>} : vector<1024x128xf32>, vector<128x128xf32>, vector<1024x128xf32> -> vector<1024x128xf32>
    %7 = vector.shape_cast %6 : vector<1024x128xf32> to vector<8x128x128xf32>
    %8 = vector.shape_cast %3 : vector<8x128xf32> to vector<8x1x128xf32>
    %9 = vector.broadcast %8 : vector<8x1x128xf32> to vector<8x128x128xf32>
    %10 = arith.addf %7, %9 : vector<8x128x128xf32>
    %11 = math.tanh %10 : vector<8x128x128xf32>
    %c0_8 = arith.constant 0 : index
    %c0_9 = arith.constant 0 : index
    %12 = vector.load %arg4[%c0_8, %c0_9] : memref<1x128xf32, #tpu.memory_space<vmem>>, vector<1x128xf32>
    %13 = vector.shape_cast %12 : vector<1x128xf32> to vector<1x1x128xf32>
    %14 = vector.broadcast %13 : vector<1x1x128xf32> to vector<8x128x128xf32>
    %15 = arith.mulf %11, %14 : vector<8x128x128xf32>
    %cst_10 = arith.constant dense<0.000000e+00> : vector<8x128xf32>
    %16 = vector.multi_reduction <add>, %15, %cst_10 [2] : vector<8x128x128xf32> to vector<8x128xf32>
    %17 = tpu.iota {dimensions = array<i32: 1>} : vector<8x128xi32>
    %c8_i32 = arith.constant 8 : i32
    %18 = vector.broadcast %c8_i32 : i32 to vector<8x128xi32>
    %19 = arith.cmpi slt, %17, %18 : vector<8x128xi32>
    %cst_11 = arith.constant 0xFF800000 : f32
    %20 = vector.broadcast %cst_11 : f32 to vector<8x128xf32>
    %21 = arith.select %19, %16, %20 : vector<8x128xi1>, vector<8x128xf32>
    %cst_12 = arith.constant dense<0xFF800000> : vector<8xf32>
    %22 = vector.multi_reduction <maximumf>, %21, %cst_12 [1] : vector<8x128xf32> to vector<8xf32>
    %23 = vector.shape_cast %22 : vector<8xf32> to vector<8x1xf32>
    %24 = vector.broadcast %23 : vector<8x1xf32> to vector<8x128xf32>
    %25 = arith.subf %21, %24 : vector<8x128xf32>
    %26 = math.exp %25 : vector<8x128xf32>
    %cst_13 = arith.constant dense<0.000000e+00> : vector<8xf32>
    %27 = vector.multi_reduction <add>, %26, %cst_13 [1] : vector<8x128xf32> to vector<8xf32>
    %28 = vector.shape_cast %27 : vector<8xf32> to vector<8x1xf32>
    %29 = vector.broadcast %28 : vector<8x1xf32> to vector<8x128xf32>
    %30 = arith.divf %26, %29 : vector<8x128xf32>
    %c0_14 = arith.constant 0 : index
    %c0_15 = arith.constant 0 : index
    %31 = vector.load %arg5[%c0_14, %c0_15] : memref<8x128xf32, #tpu.memory_space<vmem>>, vector<8x128xf32>
    tpu.vector_store %arg5[%c0_14, %c0_15], %30 {strides = array<i32>} : memref<8x128xf32, #tpu.memory_space<vmem>>, vector<8x128xf32>,
    return
  }
  func.func @transform_0(%arg0: i32) -> (i32, i32) {
    %c0_i32 = arith.constant 0 : i32
    %c0_i32_0 = arith.constant 0 : i32
    return %arg0, %c0_i32 : i32, i32
  }
  func.func @transform_1(%arg0: i32) -> (i32, i32, i32) {
    %c0_i32 = arith.constant 0 : i32
    %c0_i32_0 = arith.constant 0 : i32
    %c0_i32_1 = arith.constant 0 : i32
    return %arg0, %c0_i32, %c0_i32_0 : i32, i32, i32
  }
  func.func @transform_2(%arg0: i32) -> (i32, i32) {
    %c0_i32 = arith.constant 0 : i32
    %c0_i32_0 = arith.constant 0 : i32
    %c0_i32_1 = arith.constant 0 : i32
    return %c0_i32, %c0_i32_0 : i32, i32
  }
  func.func @transform_3(%arg0: i32) -> (i32, i32) {
    %c0_i32 = arith.constant 0 : i32
    %c0_i32_0 = arith.constant 0 : i32
    %c0_i32_1 = arith.constant 0 : i32
    return %c0_i32, %c0_i32_0 : i32, i32
  }
  func.func @transform_4(%arg0: i32) -> (i32, i32) {
    %c0_i32 = arith.constant 0 : i32
    %c0_i32_0 = arith.constant 0 : i32
    return %arg0, %c0_i32 : i32, i32
  }
}

</mosaic_0001>

<llo_original>
// kernel: tpu_custom_call.1
$region0: #{tpu_custom_call.1}
  #allocation0 [shape = 'u32[]', space=smem, size = 0x4, offset = 0x4, fixed_abs, tag = 'smem constant byte address 0x4 - core index']
  #allocation1 [shape = 'u32[72,128]{1,0:T(1,128)}', space=vmem, size = 0x9000, scoped, tag = 'internal scratch']
  %s0 = inlined_call_operand.hbm [shape: f32[8,128], index: 0, kind: input, shape index: {}]
  %s1 = inlined_call_operand.hbm [shape: f32[8,128,128], index: 1, kind: input, shape index: {}]
  %s2 = inlined_call_operand.hbm [shape: f32[256,128], index: 2, kind: input, shape index: {}]
  %s3 = inlined_call_operand.vmem [shape: f32[1,128], index: 3, kind: input, shape index: {}]
  %s4 = inlined_call_operand.hbm [shape: f32[8,128], index: 4, kind: output, shape index: {}]
  %s5 = sld [smem:[#allocation0]]
  $region38: #{tpu_custom_call.1} parent=0
    _
  %s7 = ssub.s32 1, %s5
  %s8 = scalar_select 0, %s7, %s5
  $region1: #{tpu_custom_call.1} parent=0
    #allocation2 [shape = 'u8[4096]{0}', space=vmem, size = 0x1000, scoped, tag = 'input window, operand 0, single buffered']
    #allocation3 [shape = 's32[1]{0}', space=sflag, size = 0x4, scoped, tag = 'scoped memory for tpu_custom_call.1']
    #allocation4 [shape = 's32[1]{0}', space=sflag, size = 0x4, scoped, tag = 'scoped memory for tpu_custom_call.1']
    #allocation5 [shape = 'u8[524288]{0}', space=vmem, size = 0x80000, scoped, tag = 'input window, operand 1, single buffered']
    #allocation6 [shape = 's32[1]{0}', space=sflag, size = 0x4, scoped, tag = 'scoped memory for tpu_custom_call.1']
    #allocation7 [shape = 'u8[131072]{0}', space=vmem, size = 0x20000, scoped, tag = 'input window, operand 2, single buffered']
    #allocation8 [shape = 'u8[4096]{0}', space=vmem, size = 0x1000, scoped, tag = 'output window, operand 0, single buffered']
    %9 = vsyncpa [#allocation3], 0
    %10 = vsyncpa [#allocation6], 0
    %11 = vsyncpa [#allocation4], 0
    // Predicated region
    $region2: #{tpu_custom_call.1} parent=1 // pred_check
      _
    $region3: #{tpu_custom_call.1} parent=1 // pred_check_branch
      %13 = sbr.rel (0) target = $region5
    $region4: #{tpu_custom_call.1} parent=1 // pred_region
      %15 = vsyncadd [#allocation3], 0
      %s17 = sshll.u32 %s0, 4
      %s18 = int_to_ptr.hbm [resolvable:$true] %s17
      %s19 = sshll.u32 [#allocation2], 4
      %s20 = int_to_ptr.vmem [resolvable:$true] %s19
      %22 = dma.hbm_to_vmem [thread:$0]  %s18, 128, %s20, [#allocation3]
    $region5: #{tpu_custom_call.1} parent=1 // pred_fallthru
      _
    // Predicated region
    $region6: #{tpu_custom_call.1} parent=1 // pred_check
      _
    $region7: #{tpu_custom_call.1} parent=1 // pred_check_branch
      %24 = sbr.rel (0) target = $region9
    $region8: #{tpu_custom_call.1} parent=1 // pred_region
      %26 = vsyncadd [#allocation6], 0
      %s27 = sshll.u32 %s1, 4
      %s28 = int_to_ptr.hbm [resolvable:$true] %s27
      %s29 = sshll.u32 [#allocation5], 4
      %s30 = int_to_ptr.vmem [resolvable:$true] %s29
      %35 = dma.hbm_to_vmem [thread:$0]  %s28, 16384, %s30, [#allocation6], 128, 128, 8
    $region9: #{tpu_custom_call.1} parent=1 // pred_fallthru
      _
    // Predicated region
    $region10: #{tpu_custom_call.1} parent=1 // pred_check
      _
    $region11: #{tpu_custom_call.1} parent=1 // pred_check_branch
      %37 = sbr.rel (0) target = $region13
    $region12: #{tpu_custom_call.1} parent=1 // pred_region
      %39 = vsyncadd [#allocation6], 0
      %s40 = sshll.u32 %s2, 4
      %s41 = int_to_ptr.hbm [resolvable:$true] %s40
      %s42 = sshll.u32 [#allocation7], 4
      %s43 = int_to_ptr.vmem [resolvable:$true] %s42
      %48 = dma.hbm_to_vmem [thread:$0]  %s41, 4096, %s43, [#allocation6], 128, 128, 8
    $region13: #{tpu_custom_call.1} parent=1 // pred_fallthru
      _
    // Predicated region
    $region14: #{tpu_custom_call.1} parent=1 // pred_check
      _
    $region15: #{tpu_custom_call.1} parent=1 // pred_check_branch
      %50 = sbr.rel (0) target = $region17
    $region16: #{tpu_custom_call.1} parent=1 // pred_region
      _
    $region17: #{tpu_custom_call.1} parent=1 // pred_fallthru
      _
    // Predicated region
    $region18: #{tpu_custom_call.1} parent=1 // pred_check
      _
    $region19: #{tpu_custom_call.1} parent=1 // pred_check_branch
      %52 = sbr.rel (0) target = $region21
    $region20: #{tpu_custom_call.1} parent=1 // pred_region
      %54 = dma.done [#allocation3], 128
    $region21: #{tpu_custom_call.1} parent=1 // pred_fallthru
      _
    // Predicated region
    $region22: #{tpu_custom_call.1} parent=1 // pred_check
      _
    $region23: #{tpu_custom_call.1} parent=1 // pred_check_branch
      %56 = sbr.rel (0) target = $region25
    $region24: #{tpu_custom_call.1} parent=1 // pred_region
      %58 = dma.done [#allocation6], 16384
    $region25: #{tpu_custom_call.1} parent=1 // pred_fallthru
      _
    // Predicated region
    $region26: #{tpu_custom_call.1} parent=1 // pred_check
      _
    $region27: #{tpu_custom_call.1} parent=1 // pred_check_branch
      %60 = sbr.rel (0) target = $region29
    $region28: #{tpu_custom_call.1} parent=1 // pred_region
      %62 = dma.done [#allocation6], 4096
    $region29: #{tpu_custom_call.1} parent=1 // pred_fallthru
      _
    %v63 = vld [vmem:[#allocation7] sm:$0xff]
    %v64 = vld [vmem:[#allocation7 + $0x8] sm:$0xff]
    %v65 = vld [vmem:[#allocation7 + $0x10] sm:$0xff]
    %v66 = vld [vmem:[#allocation7 + $0x18] sm:$0xff]
    %v67 = vld [vmem:[#allocation7 + $0x20] sm:$0xff]
    %v68 = vld [vmem:[#allocation7 + $0x28] sm:$0xff]
    %v69 = vld [vmem:[#allocation7 + $0x30] sm:$0xff]
    %v70 = vld [vmem:[#allocation7 + $0x38] sm:$0xff]
    %v71 = vld [vmem:[#allocation7 + $0x40] sm:$0xff]
    %v72 = vld [vmem:[#allocation7 + $0x48] sm:$0xff]
    %v73 = vld [vmem:[#allocation7 + $0x50] sm:$0xff]
    %v74 = vld [vmem:[#allocation7 + $0x58] sm:$0xff]
    %v75 = vld [vmem:[#allocation7 + $0x60] sm:$0xff]
    %v76 = vld [vmem:[#allocation7 + $0x68] sm:$0xff]
    %v77 = vld [vmem:[#allocation7 + $0x70] sm:$0xff]
    %v78 = vld [vmem:[#allocation7 + $0x78] sm:$0xff]
    %v79 = vld [vmem:[#allocation7 + $0x80] sm:$0xff]
    %v80 = vld [vmem:[#allocation7 + $0x88] sm:$0xff]
    %v81 = vld [vmem:[#allocation7 + $0x90] sm:$0xff]
    %v82 = vld [vmem:[#allocation7 + $0x98] sm:$0xff]
    %v83 = vld [vmem:[#allocation7 + $0xa0] sm:$0xff]
    %v84 = vld [vmem:[#allocation7 + $0xa8] sm:$0xff]
    %v85 = vld [vmem:[#allocation7 + $0xb0] sm:$0xff]
    %v86 = vld [vmem:[#allocation7 + $0xb8] sm:$0xff]
    %v87 = vld [vmem:[#allocation7 + $0xc0] sm:$0xff]
    %v88 = vld [vmem:[#allocation7 + $0xc8] sm:$0xff]
    %v89 = vld [vmem:[#allocation7 + $0xd0] sm:$0xff]
    %v90 = vld [vmem:[#allocation7 + $0xd8] sm:$0xff]
    %v91 = vld [vmem:[#allocation7 + $0xe0] sm:$0xff]
    %v92 = vld [vmem:[#allocation7 + $0xe8] sm:$0xff]
    %v93 = vld [vmem:[#allocation7 + $0xf0] sm:$0xff]
    %v94 = vld [vmem:[#allocation7 + $0xf8] sm:$0xff]
    %v95 = vld [vmem:[#allocation2] sm:$0xff]
    %96 = vmatpush.msra.mxu0 %v78
    %97 = vmatpush.msra.mxu0 %v77
    %98 = vmatpush.msra.mxu0 %v76
    %99 = vmatpush.msra.mxu0 %v75
    %100 = vmatpush.msra.mxu0 %v74
    %101 = vmatpush.msra.mxu0 %v73
    %102 = vmatpush.msra.mxu0 %v72
    %103 = vmatpush.msra.mxu0 %v71
    %104 = vmatpush.msra.mxu0 %v70
    %105 = vmatpush.msra.mxu0 %v69
    %106 = vmatpush.msra.mxu0 %v68
    %107 = vmatpush.msra.mxu0 %v67
    %108 = vmatpush.msra.mxu0 %v66
    %109 = vmatpush.msra.mxu0 %v65
    %110 = vmatpush.msra.mxu0 %v64
    %111 = vmatpush.msra.mxu0 %v63
    %112 = vmatmul.f32.gmra.mxu0 %v95
    %v113 = vpop.f32.mrf.mxu0
    %v114 = vadd.f32 0.0, %v113
    %115 = vdwg.mxu0
    %v116 = vld [vmem:[#allocation5] sm:$0xff]
    %v117 = vld [vmem:[#allocation5 + $0x8] sm:$0xff]
    %v118 = vld [vmem:[#allocation5 + $0x10] sm:$0xff]
    %v119 = vld [vmem:[#allocation5 + $0x18] sm:$0xff]
    %v120 = vld [vmem:[#allocation5 + $0x20] sm:$0xff]
    %v121 = vld [vmem:[#allocation5 + $0x28] sm:$0xff]
    %v122 = vld [vmem:[#allocation5 + $0x30] sm:$0xff]
    %v123 = vld [vmem:[#allocation5 + $0x38] sm:$0xff]
    %v124 = vld [vmem:[#allocation5 + $0x40] sm:$0xff]
    %v125 = vld [vmem:[#allocation5 + $0x48] sm:$0xff]
    %v126 = vld [vmem:[#allocation5 + $0x50] sm:$0xff]
    %v127 = vld [vmem:[#allocation5 + $0x58] sm:$0xff]
    %v128 = vld [vmem:[#allocation5 + $0x60] sm:$0xff]
    %v129 = vld [vmem:[#allocation5 + $0x68] sm:$0xff]
    %v130 = vld [vmem:[#allocation5 + $0x70] sm:$0xff]
    %v131 = vld [vmem:[#allocation5 + $0x78] sm:$0xff]
    %v132 = vld [vmem:[#allocation5 + $0x80] sm:$0xff]
    %v133 = vld [vmem:[#allocation5 + $0x88] sm:$0xff]
    %v134 = vld [vmem:[#allocation5 + $0x90] sm:$0xff]
    %v135 = vld [vmem:[#allocation5 + $0x98] sm:$0xff]
    %v136 = vld [vmem:[#allocation5 + $0xa0] sm:$0xff]
    %v137 = vld [vmem:[#allocation5 + $0xa8] sm:$0xff]
    %v138 = vld [vmem:[#allocation5 + $0xb0] sm:$0xff]
    %v139 = vld [vmem:[#allocation5 + $0xb8] sm:$0xff]
    %v140 = vld [vmem:[#allocation5 + $0xc0] sm:$0xff]
    %v141 = vld [vmem:[#allocation5 + $0xc8] sm:$0xff]
    %v142 = vld [vmem:[#allocation5 + $0xd0] sm:$0xff]
    %v143 = vld [vmem:[#allocation5 + $0xd8] sm:$0xff]
    %v144 = vld [vmem:[#allocation5 + $0xe0] sm:$0xff]
    %v145 = vld [vmem:[#allocation5 + $0xe8] sm:$0xff]
    %v146 = vld [vmem:[#allocation5 + $0xf0] sm:$0xff]
    %v147 = vld [vmem:[#allocation5 + $0xf8] sm:$0xff]
    %v148 = vld [vmem:[#allocation5 + $0x100] sm:$0xff]
    %v149 = vld [vmem:[#allocation5 + $0x108] sm:$0xff]
    %v150 = vld [vmem:[#allocation5 + $0x110] sm:$0xff]
    %v151 = vld [vmem:[#allocation5 + $0x118] sm:$0xff]
    %v152 = vld [vmem:[#allocation5 + $0x120] sm:$0xff]
    %v153 = vld [vmem:[#allocation5 + $0x128] sm:$0xff]
    %v154 = vld [vmem:[#allocation5 + $0x130] sm:$0xff]
    %v155 = vld [vmem:[#allocation5 + $0x138] sm:$0xff]
    %v156 = vld [vmem:[#allocation5 + $0x140] sm:$0xff]
    %v157 = vld [vmem:[#allocation5 + $0x148] sm:$0xff]
    %v158 = vld [vmem:[#allocation5 + $0x150] sm:$0xff]
    %v159 = vld [vmem:[#allocation5 + $0x158] sm:$0xff]
    %v160 = vld [vmem:[#allocation5 + $0x160] sm:$0xff]
    %v161 = vld [vmem:[#allocation5 + $0x168] sm:$0xff]
    %v162 = vld [vmem:[#allocation5 + $0x170] sm:$0xff]
    %v163 = vld [vmem:[#allocation5 + $0x178] sm:$0xff]
    %v164 = vld [vmem:[#allocation5 + $0x180] sm:$0xff]
    %v165 = vld [vmem:[#allocation5 + $0x188] sm:$0xff]
    %v166 = vld [vmem:[#allocation5 + $0x190] sm:$0xff]
    %v167 = vld [vmem:[#allocation5 + $0x198] sm:$0xff]
    %v168 = vld [vmem:[#allocation5 + $0x1a0] sm:$0xff]
    %v169 = vld [vmem:[#allocation5 + $0x1a8] sm:$0xff]
    %v170 = vld [vmem:[#allocation5 + $0x1b0] sm:$0xff]
    %v171 = vld [vmem:[#allocation5 + $0x1b8] sm:$0xff]
    %v172 = vld [vmem:[#allocation5 + $0x1c0] sm:$0xff]
    %v173 = vld [vmem:[#allocation5 + $0x1c8] sm:$0xff]
    %v174 = vld [vmem:[#allocation5 + $0x1d0] sm:$0xff]
    %v175 = vld [vmem:[#allocation5 + $0x1d8] sm:$0xff]
    %v176 = vld [vmem:[#allocation5 + $0x1e0] sm:$0xff]
    %v177 = vld [vmem:[#allocation5 + $0x1e8] sm:$0xff]
    %v178 = vld [vmem:[#allocation5 + $0x1f0] sm:$0xff]
    %v179 = vld [vmem:[#allocation5 + $0x1f8] sm:$0xff]
    %v180 = vld [vmem:[#allocation5 + $0x200] sm:$0xff]
    %v181 = vld [vmem:[#allocation5 + $0x208] sm:$0xff]
    %v182 = vld [vmem:[#allocation5 + $0x210] sm:$0xff]
    %v183 = vld [vmem:[#allocation5 + $0x218] sm:$0xff]
    %v184 = vld [vmem:[#allocation5 + $0x220] sm:$0xff]
    %v185 = vld [vmem:[#allocation5 + $0x228] sm:$0xff]
    %v186 = vld [vmem:[#allocation5 + $0x230] sm:$0xff]
    %v187 = vld [vmem:[#allocation5 + $0x238] sm:$0xff]
    %v188 = vld [vmem:[#allocation5 + $0x240] sm:$0xff]
    %v189 = vld [vmem:[#allocation5 + $0x248] sm:$0xff]
    %v190 = vld [vmem:[#allocation5 + $0x250] sm:$0xff]
    %v191 = vld [vmem:[#allocation5 + $0x258] sm:$0xff]
    %v192 = vld [vmem:[#allocation5 + $0x260] sm:$0xff]
    %v193 = vld [vmem:[#allocation5 + $0x268] sm:$0xff]
    %v194 = vld [vmem:[#allocation5 + $0x270] sm:$0xff]
    %v195 = vld [vmem:[#allocation5 + $0x278] sm:$0xff]
    %v196 = vld [vmem:[#allocation5 + $0x280] sm:$0xff]
    %v197 = vld [vmem:[#allocation5 + $0x288] sm:$0xff]
    %v198 = vld [vmem:[#allocation5 + $0x290] sm:$0xff]
    %v199 = vld [vmem:[#allocation5 + $0x298] sm:$0xff]
    %v200 = vld [vmem:[#allocation5 + $0x2a0] sm:$0xff]
    %v201 = vld [vmem:[#allocation5 + $0x2a8] sm:$0xff]
    %v202 = vld [vmem:[#allocation5 + $0x2b0] sm:$0xff]
    %v203 = vld [vmem:[#allocation5 + $0x2b8] sm:$0xff]
    %v204 = vld [vmem:[#allocation5 + $0x2c0] sm:$0xff]
    %v205 = vld [vmem:[#allocation5 + $0x2c8] sm:$0xff]
    %v206 = vld [vmem:[#allocation5 + $0x2d0] sm:$0xff]
    %v207 = vld [vmem:[#allocation5 + $0x2d8] sm:$0xff]
    %v208 = vld [vmem:[#allocation5 + $0x2e0] sm:$0xff]
    %v209 = vld [vmem:[#allocation5 + $0x2e8] sm:$0xff]
    %v210 = vld [vmem:[#allocation5 + $0x2f0] sm:$0xff]
    %v211 = vld [vmem:[#allocation5 + $0x2f8] sm:$0xff]
    %v212 = vld [vmem:[#allocation5 + $0x300] sm:$0xff]
    %v213 = vld [vmem:[#allocation5 + $0x308] sm:$0xff]
    %v214 = vld [vmem:[#allocation5 + $0x310] sm:$0xff]
    %v215 = vld [vmem:[#allocation5 + $0x318] sm:$0xff]
    %v216 = vld [vmem:[#allocation5 + $0x320] sm:$0xff]
    %v217 = vld [vmem:[#allocation5 + $0x328] sm:$0xff]
    %v218 = vld [vmem:[#allocation5 + $0x330] sm:$0xff]
    %v219 = vld [vmem:[#allocation5 + $0x338] sm:$0xff]
    %v220 = vld [vmem:[#allocation5 + $0x340] sm:$0xff]
    %v221 = vld [vmem:[#allocation5 + $0x348] sm:$0xff]
    %v222 = vld [vmem:[#allocation5 + $0x350] sm:$0xff]
    %v223 = vld [vmem:[#allocation5 + $0x358] sm:$0xff]
    %v224 = vld [vmem:[#allocation5 + $0x360] sm:$0xff]
    %v225 = vld [vmem:[#allocation5 + $0x368] sm:$0xff]
    %v226 = vld [vmem:[#allocation5 + $0x370] sm:$0xff]
    %v227 = vld [vmem:[#allocation5 + $0x378] sm:$0xff]
    %v228 = vld [vmem:[#allocation5 + $0x380] sm:$0xff]
    %v229 = vld [vmem:[#allocation5 + $0x388] sm:$0xff]
    %v230 = vld [vmem:[#allocation5 + $0x390] sm:$0xff]
    %v231 = vld [vmem:[#allocation5 + $0x398] sm:$0xff]
    %v232 = vld [vmem:[#allocation5 + $0x3a0] sm:$0xff]
    %v233 = vld [vmem:[#allocation5 + $0x3a8] sm:$0xff]
    %v234 = vld [vmem:[#allocation5 + $0x3b0] sm:$0xff]
    %v235 = vld [vmem:[#allocation5 + $0x3b8] sm:$0xff]
    %v236 = vld [vmem:[#allocation5 + $0x3c0] sm:$0xff]
    %v237 = vld [vmem:[#allocation5 + $0x3c8] sm:$0xff]
    %v238 = vld [vmem:[#allocation5 + $0x3d0] sm:$0xff]
    %v239 = vld [vmem:[#allocation5 + $0x3d8] sm:$0xff]
    %v240 = vld [vmem:[#allocation5 + $0x3e0] sm:$0xff]
    %v241 = vld [vmem:[#allocation5 + $0x3e8] sm:$0xff]
    %v242 = vld [vmem:[#allocation5 + $0x3f0] sm:$0xff]
    %v243 = vld [vmem:[#allocation5 + $0x3f8] sm:$0xff]
    %244 = vmatpush.msra.mxu0 %v94
    %245 = vmatpush.msra.mxu0 %v93
    %246 = vmatpush.msra.mxu0 %v92
    %247 = vmatpush.msra.mxu0 %v91
    %248 = vmatpush.msra.mxu0 %v90
    %249 = vmatpush.msra.mxu0 %v89
    %250 = vmatpush.msra.mxu0 %v88
    %251 = vmatpush.msra.mxu0 %v87
    %252 = vmatpush.msra.mxu0 %v86
    %253 = vmatpush.msra.mxu0 %v85
    %254 = vmatpush.msra.mxu0 %v84
    %255 = vmatpush.msra.mxu0 %v83
    %256 = vmatpush.msra.mxu0 %v82
    %257 = vmatpush.msra.mxu0 %v81
    %258 = vmatpush.msra.mxu0 %v80
    %259 = vmatpush.msra.mxu0 %v79
    %260 = vmatmul.f32.gmra.mxu0 %v116
    %v261 = vpop.f32.mrf.mxu0
    %v262 = vadd.f32 0.0, %v261
    %263 = vmatmul.f32.gmra.mxu0 %v117
    %v264 = vpop.f32.mrf.mxu0
    %v265 = vadd.f32 0.0, %v264
    %266 = vmatmul.f32.gmra.mxu0 %v118
    %v267 = vpop.f32.mrf.mxu0
    %v268 = vadd.f32 0.0, %v267
    %269 = vmatmul.f32.gmra.mxu0 %v119
    %v270 = vpop.f32.mrf.mxu0
    %v271 = vadd.f32 0.0, %v270
    %272 = vmatmul.f32.gmra.mxu0 %v120
    %v273 = vpop.f32.mrf.mxu0
    %v274 = vadd.f32 0.0, %v273
    %275 = vmatmul.f32.gmra.mxu0 %v121
    %v276 = vpop.f32.mrf.mxu0
    %v277 = vadd.f32 0.0, %v276
    %278 = vmatmul.f32.gmra.mxu0 %v122
    %v279 = vpop.f32.mrf.mxu0
    %v280 = vadd.f32 0.0, %v279
    %281 = vmatmul.f32.gmra.mxu0 %v123
    %v282 = vpop.f32.mrf.mxu0
    %v283 = vadd.f32 0.0, %v282
    %284 = vmatmul.f32.gmra.mxu0 %v124
    %v285 = vpop.f32.mrf.mxu0
    %v286 = vadd.f32 0.0, %v285
    %287 = vmatmul.f32.gmra.mxu0 %v125
    %v288 = vpop.f32.mrf.mxu0
    %v289 = vadd.f32 0.0, %v288
    %290 = vmatmul.f32.gmra.mxu0 %v126
    %v291 = vpop.f32.mrf.mxu0
    %v292 = vadd.f32 0.0, %v291
    %293 = vmatmul.f32.gmra.mxu0 %v127
    %v294 = vpop.f32.mrf.mxu0
    %v295 = vadd.f32 0.0, %v294
    %296 = vmatmul.f32.gmra.mxu0 %v128
    %v297 = vpop.f32.mrf.mxu0
    %v298 = vadd.f32 0.0, %v297
    %299 = vmatmul.f32.gmra.mxu0 %v129
    %v300 = vpop.f32.mrf.mxu0
    %v301 = vadd.f32 0.0, %v300
    %302 = vmatmul.f32.gmra.mxu0 %v130
    %v303 = vpop.f32.mrf.mxu0
    %v304 = vadd.f32 0.0, %v303
    %305 = vmatmul.f32.gmra.mxu0 %v131
    %v306 = vpop.f32.mrf.mxu0
    %v307 = vadd.f32 0.0, %v306
    %308 = vmatmul.f32.gmra.mxu0 %v132
    %v309 = vpop.f32.mrf.mxu0
    %v310 = vadd.f32 0.0, %v309
    %311 = vmatmul.f32.gmra.mxu0 %v133
    %v312 = vpop.f32.mrf.mxu0
    %v313 = vadd.f32 0.0, %v312
    %314 = vmatmul.f32.gmra.mxu0 %v134
    %v315 = vpop.f32.mrf.mxu0
    %v316 = vadd.f32 0.0, %v315
    %317 = vmatmul.f32.gmra.mxu0 %v135
    %v318 = vpop.f32.mrf.mxu0
    %v319 = vadd.f32 0.0, %v318
    %320 = vmatmul.f32.gmra.mxu0 %v136
    %v321 = vpop.f32.mrf.mxu0
    %v322 = vadd.f32 0.0, %v321
    %323 = vmatmul.f32.gmra.mxu0 %v137
    %v324 = vpop.f32.mrf.mxu0
    %v325 = vadd.f32 0.0, %v324
    %326 = vmatmul.f32.gmra.mxu0 %v138
    %v327 = vpop.f32.mrf.mxu0
    %v328 = vadd.f32 0.0, %v327
    %329 = vmatmul.f32.gmra.mxu0 %v139
    %v330 = vpop.f32.mrf.mxu0
    %v331 = vadd.f32 0.0, %v330
    %332 = vmatmul.f32.gmra.mxu0 %v140
    %v333 = vpop.f32.mrf.mxu0
    %v334 = vadd.f32 0.0, %v333
    %335 = vmatmul.f32.gmra.mxu0 %v141
    %v336 = vpop.f32.mrf.mxu0
    %v337 = vadd.f32 0.0, %v336
    %338 = vmatmul.f32.gmra.mxu0 %v142
    %v339 = vpop.f32.mrf.mxu0
    %v340 = vadd.f32 0.0, %v339
    %341 = vmatmul.f32.gmra.mxu0 %v143
    %v342 = vpop.f32.mrf.mxu0
    %v343 = vadd.f32 0.0, %v342
    %344 = vmatmul.f32.gmra.mxu0 %v144
    %v345 = vpop.f32.mrf.mxu0
    %v346 = vadd.f32 0.0, %v345
    %347 = vmatmul.f32.gmra.mxu0 %v145
    %v348 = vpop.f32.mrf.mxu0
    %v349 = vadd.f32 0.0, %v348
    %350 = vmatmul.f32.gmra.mxu0 %v146
    %v351 = vpop.f32.mrf.mxu0
    %v352 = vadd.f32 0.0, %v351
    %353 = vmatmul.f32.gmra.mxu0 %v147
    %v354 = vpop.f32.mrf.mxu0
    %v355 = vadd.f32 0.0, %v354
    %356 = vmatmul.f32.gmra.mxu0 %v148
    %v357 = vpop.f32.mrf.mxu0
    %v358 = vadd.f32 0.0, %v357
    %359 = vmatmul.f32.gmra.mxu0 %v149
    %v360 = vpop.f32.mrf.mxu0
    %v361 = vadd.f32 0.0, %v360
    %362 = vmatmul.f32.gmra.mxu0 %v150
    %v363 = vpop.f32.mrf.mxu0
    %v364 = vadd.f32 0.0, %v363
    %365 = vmatmul.f32.gmra.mxu0 %v151
    %v366 = vpop.f32.mrf.mxu0
    %v367 = vadd.f32 0.0, %v366
    %368 = vmatmul.f32.gmra.mxu0 %v152
    %v369 = vpop.f32.mrf.mxu0
    %v370 = vadd.f32 0.0, %v369
    %371 = vmatmul.f32.gmra.mxu0 %v153
    %v372 = vpop.f32.mrf.mxu0
    %v373 = vadd.f32 0.0, %v372
    %374 = vmatmul.f32.gmra.mxu0 %v154
    %v375 = vpop.f32.mrf.mxu0
    %v376 = vadd.f32 0.0, %v375
    %377 = vmatmul.f32.gmra.mxu0 %v155
    %v378 = vpop.f32.mrf.mxu0
    %v379 = vadd.f32 0.0, %v378
    %380 = vmatmul.f32.gmra.mxu0 %v156
    %v381 = vpop.f32.mrf.mxu0
    %v382 = vadd.f32 0.0, %v381
    %383 = vmatmul.f32.gmra.mxu0 %v157
    %v384 = vpop.f32.mrf.mxu0
    %v385 = vadd.f32 0.0, %v384
    %386 = vmatmul.f32.gmra.mxu0 %v158
    %v387 = vpop.f32.mrf.mxu0
    %v388 = vadd.f32 0.0, %v387
    %389 = vmatmul.f32.gmra.mxu0 %v159
    %v390 = vpop.f32.mrf.mxu0
    %v391 = vadd.f32 0.0, %v390
    %392 = vmatmul.f32.gmra.mxu0 %v160
    %v393 = vpop.f32.mrf.mxu0
    %v394 = vadd.f32 0.0, %v393
    %395 = vmatmul.f32.gmra.mxu0 %v161
    %v396 = vpop.f32.mrf.mxu0
    %v397 = vadd.f32 0.0, %v396
    %398 = vmatmul.f32.gmra.mxu0 %v162
    %v399 = vpop.f32.mrf.mxu0
    %v400 = vadd.f32 0.0, %v399
    %401 = vmatmul.f32.gmra.mxu0 %v163
    %v402 = vpop.f32.mrf.mxu0
    %v403 = vadd.f32 0.0, %v402
    %404 = vmatmul.f32.gmra.mxu0 %v164
    %v405 = vpop.f32.mrf.mxu0
    %v406 = vadd.f32 0.0, %v405
    %407 = vmatmul.f32.gmra.mxu0 %v165
    %v408 = vpop.f32.mrf.mxu0
    %v409 = vadd.f32 0.0, %v408
    %410 = vmatmul.f32.gmra.mxu0 %v166
    %v411 = vpop.f32.mrf.mxu0
    %v412 = vadd.f32 0.0, %v411
    %413 = vmatmul.f32.gmra.mxu0 %v167
    %v414 = vpop.f32.mrf.mxu0
    %v415 = vadd.f32 0.0, %v414
    %416 = vmatmul.f32.gmra.mxu0 %v168
    %v417 = vpop.f32.mrf.mxu0
    %v418 = vadd.f32 0.0, %v417
    %419 = vmatmul.f32.gmra.mxu0 %v169
    %v420 = vpop.f32.mrf.mxu0
    %v421 = vadd.f32 0.0, %v420
    %422 = vmatmul.f32.gmra.mxu0 %v170
    %v423 = vpop.f32.mrf.mxu0
    %v424 = vadd.f32 0.0, %v423
    %425 = vmatmul.f32.gmra.mxu0 %v171
    %v426 = vpop.f32.mrf.mxu0
    %v427 = vadd.f32 0.0, %v426
    %428 = vmatmul.f32.gmra.mxu0 %v172
    %v429 = vpop.f32.mrf.mxu0
    %v430 = vadd.f32 0.0, %v429
    %431 = vmatmul.f32.gmra.mxu0 %v173
    %v432 = vpop.f32.mrf.mxu0
    %v433 = vadd.f32 0.0, %v432
    %434 = vmatmul.f32.gmra.mxu0 %v174
    %v435 = vpop.f32.mrf.mxu0
    %v436 = vadd.f32 0.0, %v435
    %437 = vmatmul.f32.gmra.mxu0 %v175
    %v438 = vpop.f32.mrf.mxu0
    %v439 = vadd.f32 0.0, %v438
    %440 = vmatmul.f32.gmra.mxu0 %v176
    %v441 = vpop.f32.mrf.mxu0
    %v442 = vadd.f32 0.0, %v441
    %443 = vmatmul.f32.gmra.mxu0 %v177
    %v444 = vpop.f32.mrf.mxu0
    %v445 = vadd.f32 0.0, %v444
    %446 = vmatmul.f32.gmra.mxu0 %v178
    %v447 = vpop.f32.mrf.mxu0
    %v448 = vadd.f32 0.0, %v447
    %449 = vmatmul.f32.gmra.mxu0 %v179
    %v450 = vpop.f32.mrf.mxu0
    %v451 = vadd.f32 0.0, %v450
    %452 = vmatmul.f32.gmra.mxu0 %v180
    %v453 = vpop.f32.mrf.mxu0
    %v454 = vadd.f32 0.0, %v453
    %455 = vmatmul.f32.gmra.mxu0 %v181
    %v456 = vpop.f32.mrf.mxu0
    %v457 = vadd.f32 0.0, %v456
    %458 = vmatmul.f32.gmra.mxu0 %v182
    %v459 = vpop.f32.mrf.mxu0
    %v460 = vadd.f32 0.0, %v459
    %461 = vmatmul.f32.gmra.mxu0 %v183
    %v462 = vpop.f32.mrf.mxu0
    %v463 = vadd.f32 0.0, %v462
    %464 = vmatmul.f32.gmra.mxu0 %v184
    %v465 = vpop.f32.mrf.mxu0
    %v466 = vadd.f32 0.0, %v465
    %467 = vmatmul.f32.gmra.mxu0 %v185
    %v468 = vpop.f32.mrf.mxu0
    %v469 = vadd.f32 0.0, %v468
    %470 = vmatmul.f32.gmra.mxu0 %v186
    %v471 = vpop.f32.mrf.mxu0
    %v472 = vadd.f32 0.0, %v471
    %473 = vmatmul.f32.gmra.mxu0 %v187
    %v474 = vpop.f32.mrf.mxu0
    %v475 = vadd.f32 0.0, %v474
    %476 = vmatmul.f32.gmra.mxu0 %v188
    %v477 = vpop.f32.mrf.mxu0
    %v478 = vadd.f32 0.0, %v477
    %479 = vmatmul.f32.gmra.mxu0 %v189
    %v480 = vpop.f32.mrf.mxu0
    %v481 = vadd.f32 0.0, %v480
    %482 = vmatmul.f32.gmra.mxu0 %v190
    %v483 = vpop.f32.mrf.mxu0
    %v484 = vadd.f32 0.0, %v483
    %485 = vmatmul.f32.gmra.mxu0 %v191
    %v486 = vpop.f32.mrf.mxu0
    %v487 = vadd.f32 0.0, %v486
    %488 = vmatmul.f32.gmra.mxu0 %v192
    %v489 = vpop.f32.mrf.mxu0
    %v490 = vadd.f32 0.0, %v489
    %491 = vmatmul.f32.gmra.mxu0 %v193
    %v492 = vpop.f32.mrf.mxu0
    %v493 = vadd.f32 0.0, %v492
    %494 = vmatmul.f32.gmra.mxu0 %v194
    %v495 = vpop.f32.mrf.mxu0
    %v496 = vadd.f32 0.0, %v495
    %497 = vmatmul.f32.gmra.mxu0 %v195
    %v498 = vpop.f32.mrf.mxu0
    %v499 = vadd.f32 0.0, %v498
    %500 = vmatmul.f32.gmra.mxu0 %v196
    %v501 = vpop.f32.mrf.mxu0
    %v502 = vadd.f32 0.0, %v501
    %503 = vmatmul.f32.gmra.mxu0 %v197
    %v504 = vpop.f32.mrf.mxu0
    %v505 = vadd.f32 0.0, %v504
    %506 = vmatmul.f32.gmra.mxu0 %v198
    %v507 = vpop.f32.mrf.mxu0
    %v508 = vadd.f32 0.0, %v507
    %509 = vmatmul.f32.gmra.mxu0 %v199
    %v510 = vpop.f32.mrf.mxu0
    %v511 = vadd.f32 0.0, %v510
    %512 = vmatmul.f32.gmra.mxu0 %v200
    %v513 = vpop.f32.mrf.mxu0
    %v514 = vadd.f32 0.0, %v513
    %515 = vmatmul.f32.gmra.mxu0 %v201
    %v516 = vpop.f32.mrf.mxu0
    %v517 = vadd.f32 0.0, %v516
    %518 = vmatmul.f32.gmra.mxu0 %v202
    %v519 = vpop.f32.mrf.mxu0
    %v520 = vadd.f32 0.0, %v519
    %521 = vmatmul.f32.gmra.mxu0 %v203
    %v522 = vpop.f32.mrf.mxu0
    %v523 = vadd.f32 0.0, %v522
    %524 = vmatmul.f32.gmra.mxu0 %v204
    %v525 = vpop.f32.mrf.mxu0
    %v526 = vadd.f32 0.0, %v525
    %527 = vmatmul.f32.gmra.mxu0 %v205
    %v528 = vpop.f32.mrf.mxu0
    %v529 = vadd.f32 0.0, %v528
    %530 = vmatmul.f32.gmra.mxu0 %v206
    %v531 = vpop.f32.mrf.mxu0
    %v532 = vadd.f32 0.0, %v531
    %533 = vmatmul.f32.gmra.mxu0 %v207
    %v534 = vpop.f32.mrf.mxu0
    %v535 = vadd.f32 0.0, %v534
    %536 = vmatmul.f32.gmra.mxu0 %v208
    %v537 = vpop.f32.mrf.mxu0
    %v538 = vadd.f32 0.0, %v537
    %539 = vmatmul.f32.gmra.mxu0 %v209
    %v540 = vpop.f32.mrf.mxu0
    %v541 = vadd.f32 0.0, %v540
    %542 = vmatmul.f32.gmra.mxu0 %v210
    %v543 = vpop.f32.mrf.mxu0
    %v544 = vadd.f32 0.0, %v543
    %545 = vmatmul.f32.gmra.mxu0 %v211
    %v546 = vpop.f32.mrf.mxu0
    %v547 = vadd.f32 0.0, %v546
    %548 = vmatmul.f32.gmra.mxu0 %v212
    %v549 = vpop.f32.mrf.mxu0
    %v550 = vadd.f32 0.0, %v549
    %551 = vmatmul.f32.gmra.mxu0 %v213
    %v552 = vpop.f32.mrf.mxu0
    %v553 = vadd.f32 0.0, %v552
    %554 = vmatmul.f32.gmra.mxu0 %v214
    %v555 = vpop.f32.mrf.mxu0
    %v556 = vadd.f32 0.0, %v555
    %557 = vmatmul.f32.gmra.mxu0 %v215
    %v558 = vpop.f32.mrf.mxu0
    %v559 = vadd.f32 0.0, %v558
    %560 = vmatmul.f32.gmra.mxu0 %v216
    %v561 = vpop.f32.mrf.mxu0
    %v562 = vadd.f32 0.0, %v561
    %563 = vmatmul.f32.gmra.mxu0 %v217
    %v564 = vpop.f32.mrf.mxu0
    %v565 = vadd.f32 0.0, %v564
    %566 = vmatmul.f32.gmra.mxu0 %v218
    %v567 = vpop.f32.mrf.mxu0
    %v568 = vadd.f32 0.0, %v567
    %569 = vmatmul.f32.gmra.mxu0 %v219
    %v570 = vpop.f32.mrf.mxu0
    %v571 = vadd.f32 0.0, %v570
    %572 = vmatmul.f32.gmra.mxu0 %v220
    %v573 = vpop.f32.mrf.mxu0
    %v574 = vadd.f32 0.0, %v573
    %575 = vmatmul.f32.gmra.mxu0 %v221
    %v576 = vpop.f32.mrf.mxu0
    %v577 = vadd.f32 0.0, %v576
    %578 = vmatmul.f32.gmra.mxu0 %v222
    %v579 = vpop.f32.mrf.mxu0
    %v580 = vadd.f32 0.0, %v579
    %581 = vmatmul.f32.gmra.mxu0 %v223
    %v582 = vpop.f32.mrf.mxu0
    %v583 = vadd.f32 0.0, %v582
    %584 = vmatmul.f32.gmra.mxu0 %v224
    %v585 = vpop.f32.mrf.mxu0
    %v586 = vadd.f32 0.0, %v585
    %587 = vmatmul.f32.gmra.mxu0 %v225
    %v588 = vpop.f32.mrf.mxu0
    %v589 = vadd.f32 0.0, %v588
    %590 = vmatmul.f32.gmra.mxu0 %v226
    %v591 = vpop.f32.mrf.mxu0
    %v592 = vadd.f32 0.0, %v591
    %593 = vmatmul.f32.gmra.mxu0 %v227
    %v594 = vpop.f32.mrf.mxu0
    %v595 = vadd.f32 0.0, %v594
    %596 = vmatmul.f32.gmra.mxu0 %v228
    %v597 = vpop.f32.mrf.mxu0
    %v598 = vadd.f32 0.0, %v597
    %599 = vmatmul.f32.gmra.mxu0 %v229
    %v600 = vpop.f32.mrf.mxu0
    %v601 = vadd.f32 0.0, %v600
    %602 = vmatmul.f32.gmra.mxu0 %v230
    %v603 = vpop.f32.mrf.mxu0
    %v604 = vadd.f32 0.0, %v603
    %605 = vmatmul.f32.gmra.mxu0 %v231
    %v606 = vpop.f32.mrf.mxu0
    %v607 = vadd.f32 0.0, %v606
    %608 = vmatmul.f32.gmra.mxu0 %v232
    %v609 = vpop.f32.mrf.mxu0
    %v610 = vadd.f32 0.0, %v609
    %611 = vmatmul.f32.gmra.mxu0 %v233
    %v612 = vpop.f32.mrf.mxu0
    %v613 = vadd.f32 0.0, %v612
    %614 = vmatmul.f32.gmra.mxu0 %v234
    %v615 = vpop.f32.mrf.mxu0
    %v616 = vadd.f32 0.0, %v615
    %617 = vmatmul.f32.gmra.mxu0 %v235
    %v618 = vpop.f32.mrf.mxu0
    %v619 = vadd.f32 0.0, %v618
    %620 = vmatmul.f32.gmra.mxu0 %v236
    %v621 = vpop.f32.mrf.mxu0
    %v622 = vadd.f32 0.0, %v621
    %623 = vmatmul.f32.gmra.mxu0 %v237
    %v624 = vpop.f32.mrf.mxu0
    %v625 = vadd.f32 0.0, %v624
    %626 = vmatmul.f32.gmra.mxu0 %v238
    %v627 = vpop.f32.mrf.mxu0
    %v628 = vadd.f32 0.0, %v627
    %629 = vmatmul.f32.gmra.mxu0 %v239
    %v630 = vpop.f32.mrf.mxu0
    %v631 = vadd.f32 0.0, %v630
    %632 = vmatmul.f32.gmra.mxu0 %v240
    %v633 = vpop.f32.mrf.mxu0
    %v634 = vadd.f32 0.0, %v633
    %635 = vmatmul.f32.gmra.mxu0 %v241
    %v636 = vpop.f32.mrf.mxu0
    %v637 = vadd.f32 0.0, %v636
    %638 = vmatmul.f32.gmra.mxu0 %v242
    %v639 = vpop.f32.mrf.mxu0
    %v640 = vadd.f32 0.0, %v639
    %641 = vmatmul.f32.gmra.mxu0 %v243
    %v642 = vpop.f32.mrf.mxu0
    %v643 = vadd.f32 0.0, %v642
    %644 = vdwg.mxu0
    %v646 = vrot.slane %v114, 1
    %v647 = vrot.slane %v114, 2
    %v648 = vrot.slane %v114, 3
    %v649 = vrot.slane %v114, 4
    %v650 = vrot.slane %v114, 5
    %v651 = vrot.slane %v114, 6
    %v652 = vrot.slane %v114, 7
    %v653 = vperm.slane %v114, 0
    %v654 = vperm.slane %v646, 0
    %v655 = vperm.slane %v647, 0
    %v656 = vperm.slane %v648, 0
    %v657 = vperm.slane %v649, 0
    %v658 = vperm.slane %v650, 0
    %v659 = vperm.slane %v651, 0
    %v660 = vperm.slane %v652, 0
    %v669 = vadd.f32 %v262, %v653
    %v670 = vadd.f32 %v265, %v653
    %v671 = vadd.f32 %v268, %v653
    %v672 = vadd.f32 %v271, %v653
    %v673 = vadd.f32 %v274, %v653
    %v674 = vadd.f32 %v277, %v653
    %v675 = vadd.f32 %v280, %v653
    %v676 = vadd.f32 %v283, %v653
    %v677 = vadd.f32 %v286, %v653
    %v678 = vadd.f32 %v289, %v653
    %v679 = vadd.f32 %v292, %v653
    %v680 = vadd.f32 %v295, %v653
    %v681 = vadd.f32 %v298, %v653
    %v682 = vadd.f32 %v301, %v653
    %v683 = vadd.f32 %v304, %v653
    %v684 = vadd.f32 %v307, %v653
    %v685 = vadd.f32 %v310, %v654
    %v686 = vadd.f32 %v313, %v654
    %v687 = vadd.f32 %v316, %v654
    %v688 = vadd.f32 %v319, %v654
    %v689 = vadd.f32 %v322, %v654
    %v690 = vadd.f32 %v325, %v654
    %v691 = vadd.f32 %v328, %v654
    %v692 = vadd.f32 %v331, %v654
    %v693 = vadd.f32 %v334, %v654
    %v694 = vadd.f32 %v337, %v654
    %v695 = vadd.f32 %v340, %v654
    %v696 = vadd.f32 %v343, %v654
    %v697 = vadd.f32 %v346, %v654
    %v698 = vadd.f32 %v349, %v654
    %v699 = vadd.f32 %v352, %v654
    %v700 = vadd.f32 %v355, %v654
    %v701 = vadd.f32 %v358, %v655
    %v702 = vadd.f32 %v361, %v655
    %v703 = vadd.f32 %v364, %v655
    %v704 = vadd.f32 %v367, %v655
    %v705 = vadd.f32 %v370, %v655
    %v706 = vadd.f32 %v373, %v655
    %v707 = vadd.f32 %v376, %v655
    %v708 = vadd.f32 %v379, %v655
    %v709 = vadd.f32 %v382, %v655
    %v710 = vadd.f32 %v385, %v655
    %v711 = vadd.f32 %v388, %v655
    %v712 = vadd.f32 %v391, %v655
    %v713 = vadd.f32 %v394, %v655
    %v714 = vadd.f32 %v397, %v655
    %v715 = vadd.f32 %v400, %v655
    %v716 = vadd.f32 %v403, %v655
    %v717 = vadd.f32 %v406, %v656
    %v718 = vadd.f32 %v409, %v656
    %v719 = vadd.f32 %v412, %v656
    %v720 = vadd.f32 %v415, %v656
    %v721 = vadd.f32 %v418, %v656
    %v722 = vadd.f32 %v421, %v656
    %v723 = vadd.f32 %v424, %v656
    %v724 = vadd.f32 %v427, %v656
    %v725 = vadd.f32 %v430, %v656
    %v726 = vadd.f32 %v433, %v656
    %v727 = vadd.f32 %v436, %v656
    %v728 = vadd.f32 %v439, %v656
    %v729 = vadd.f32 %v442, %v656
    %v730 = vadd.f32 %v445, %v656
    %v731 = vadd.f32 %v448, %v656
    %v732 = vadd.f32 %v451, %v656
    %v733 = vadd.f32 %v454, %v657
    %v734 = vadd.f32 %v457, %v657
    %v735 = vadd.f32 %v460, %v657
    %v736 = vadd.f32 %v463, %v657
    %v737 = vadd.f32 %v466, %v657
    %v738 = vadd.f32 %v469, %v657
    %v739 = vadd.f32 %v472, %v657
    %v740 = vadd.f32 %v475, %v657
    %v741 = vadd.f32 %v478, %v657
    %v742 = vadd.f32 %v481, %v657
    %v743 = vadd.f32 %v484, %v657
    %v744 = vadd.f32 %v487, %v657
    %v745 = vadd.f32 %v490, %v657
    %v746 = vadd.f32 %v493, %v657
    %v747 = vadd.f32 %v496, %v657
    %v748 = vadd.f32 %v499, %v657
    %v749 = vadd.f32 %v502, %v658
    %v750 = vadd.f32 %v505, %v658
    %v751 = vadd.f32 %v508, %v658
    %v752 = vadd.f32 %v511, %v658
    %v753 = vadd.f32 %v514, %v658
    %v754 = vadd.f32 %v517, %v658
    %v755 = vadd.f32 %v520, %v658
    %v756 = vadd.f32 %v523, %v658
    %v757 = vadd.f32 %v526, %v658
    %v758 = vadd.f32 %v529, %v658
    %v759 = vadd.f32 %v532, %v658
    %v760 = vadd.f32 %v535, %v658
    %v761 = vadd.f32 %v538, %v658
    %v762 = vadd.f32 %v541, %v658
    %v763 = vadd.f32 %v544, %v658
    %v764 = vadd.f32 %v547, %v658
    %v765 = vadd.f32 %v550, %v659
    %v766 = vadd.f32 %v553, %v659
    %v767 = vadd.f32 %v556, %v659
    %v768 = vadd.f32 %v559, %v659
    %v769 = vadd.f32 %v562, %v659
    %v770 = vadd.f32 %v565, %v659
    %v771 = vadd.f32 %v568, %v659
    %v772 = vadd.f32 %v571, %v659
    %v773 = vadd.f32 %v574, %v659
    %v774 = vadd.f32 %v577, %v659
    %v775 = vadd.f32 %v580, %v659
    %v776 = vadd.f32 %v583, %v659
    %v777 = vadd.f32 %v586, %v659
    %v778 = vadd.f32 %v589, %v659
    %v779 = vadd.f32 %v592, %v659
    %v780 = vadd.f32 %v595, %v659
    %v781 = vadd.f32 %v598, %v660
    %v782 = vadd.f32 %v601, %v660
    %v783 = vadd.f32 %v604, %v660
    %v784 = vadd.f32 %v607, %v660
    %v785 = vadd.f32 %v610, %v660
    %v786 = vadd.f32 %v613, %v660
    %v787 = vadd.f32 %v616, %v660
    %v788 = vadd.f32 %v619, %v660
    %v789 = vadd.f32 %v622, %v660
    %v790 = vadd.f32 %v625, %v660
    %v791 = vadd.f32 %v628, %v660
    %v792 = vadd.f32 %v631, %v660
    %v793 = vadd.f32 %v634, %v660
    %v794 = vadd.f32 %v637, %v660
    %v795 = vadd.f32 %v640, %v660
    %v796 = vadd.f32 %v643, %v660
    %v797 = vtanh.pop %v669
    %v798 = vtanh.pop %v670
    %v799 = vtanh.pop %v671
    %v800 = vtanh.pop %v672
    %v801 = vtanh.pop %v673
    %v802 = vtanh.pop %v674
    %v803 = vtanh.pop %v675
    %v804 = vtanh.pop %v676
    %v805 = vtanh.pop %v677
    %v806 = vtanh.pop %v678
    %v807 = vtanh.pop %v679
    %v808 = vtanh.pop %v680
    %v809 = vtanh.pop %v681
    %v810 = vtanh.pop %v682
    %v811 = vtanh.pop %v683
    %v812 = vtanh.pop %v684
    %v813 = vtanh.pop %v685
    %v814 = vtanh.pop %v686
    %v815 = vtanh.pop %v687
    %v816 = vtanh.pop %v688
    %v817 = vtanh.pop %v689
    %v818 = vtanh.pop %v690
    %v819 = vtanh.pop %v691
    %v820 = vtanh.pop %v692
    %v821 = vtanh.pop %v693
    %v822 = vtanh.pop %v694
    %v823 = vtanh.pop %v695
    %v824 = vtanh.pop %v696
    %v825 = vtanh.pop %v697
    %v826 = vtanh.pop %v698
    %v827 = vtanh.pop %v699
    %v828 = vtanh.pop %v700
    %v829 = vtanh.pop %v701
    %v830 = vtanh.pop %v702
    %v831 = vtanh.pop %v703
    %v832 = vtanh.pop %v704
    %v833 = vtanh.pop %v705
    %v834 = vtanh.pop %v706
    %v835 = vtanh.pop %v707
    %v836 = vtanh.pop %v708
    %v837 = vtanh.pop %v709
    %v838 = vtanh.pop %v710
    %v839 = vtanh.pop %v711
    %v840 = vtanh.pop %v712
    %v841 = vtanh.pop %v713
    %v842 = vtanh.pop %v714
    %v843 = vtanh.pop %v715
    %v844 = vtanh.pop %v716
    %v845 = vtanh.pop %v717
    %v846 = vtanh.pop %v718
    %v847 = vtanh.pop %v719
    %v848 = vtanh.pop %v720
    %v849 = vtanh.pop %v721
    %v850 = vtanh.pop %v722
    %v851 = vtanh.pop %v723
    %v852 = vtanh.pop %v724
    %v853 = vtanh.pop %v725
    %v854 = vtanh.pop %v726
    %v855 = vtanh.pop %v727
    %v856 = vtanh.pop %v728
    %v857 = vtanh.pop %v729
    %v858 = vtanh.pop %v730
    %v859 = vtanh.pop %v731
    %v860 = vtanh.pop %v732
    %v861 = vtanh.pop %v733
    %v862 = vtanh.pop %v734
    %v863 = vtanh.pop %v735
    %v864 = vtanh.pop %v736
    %v865 = vtanh.pop %v737
    %v866 = vtanh.pop %v738
    %v867 = vtanh.pop %v739
    %v868 = vtanh.pop %v740
    %v869 = vtanh.pop %v741
    %v870 = vtanh.pop %v742
    %v871 = vtanh.pop %v743
    %v872 = vtanh.pop %v744
    %v873 = vtanh.pop %v745
    %v874 = vtanh.pop %v746
    %v875 = vtanh.pop %v747
    %v876 = vtanh.pop %v748
    %v877 = vtanh.pop %v749
    %v878 = vtanh.pop %v750
    %v879 = vtanh.pop %v751
    %v880 = vtanh.pop %v752
    %v881 = vtanh.pop %v753
    %v882 = vtanh.pop %v754
    %v883 = vtanh.pop %v755
    %v884 = vtanh.pop %v756
    %v885 = vtanh.pop %v757
    %v886 = vtanh.pop %v758
    %v887 = vtanh.pop %v759
    %v888 = vtanh.pop %v760
    %v889 = vtanh.pop %v761
    %v890 = vtanh.pop %v762
    %v891 = vtanh.pop %v763
    %v892 = vtanh.pop %v764
    %v893 = vtanh.pop %v765
    %v894 = vtanh.pop %v766
    %v895 = vtanh.pop %v767
    %v896 = vtanh.pop %v768
    %v897 = vtanh.pop %v769
    %v898 = vtanh.pop %v770
    %v899 = vtanh.pop %v771
    %v900 = vtanh.pop %v772
    %v901 = vtanh.pop %v773
    %v902 = vtanh.pop %v774
    %v903 = vtanh.pop %v775
    %v904 = vtanh.pop %v776
    %v905 = vtanh.pop %v777
    %v906 = vtanh.pop %v778
    %v907 = vtanh.pop %v779
    %v908 = vtanh.pop %v780
    %v909 = vtanh.pop %v781
    %v910 = vtanh.pop %v782
    %v911 = vtanh.pop %v783
    %v912 = vtanh.pop %v784
    %v913 = vtanh.pop %v785
    %v914 = vtanh.pop %v786
    %v915 = vtanh.pop %v787
    %v916 = vtanh.pop %v788
    %v917 = vtanh.pop %v789
    %v918 = vtanh.pop %v790
    %v919 = vtanh.pop %v791
    %v920 = vtanh.pop %v792
    %v921 = vtanh.pop %v793
    %v922 = vtanh.pop %v794
    %v923 = vtanh.pop %v795
    %v924 = vtanh.pop %v796
    %v925 = vld [vmem:[%s3] sm:$0x1]
    %v927 = vperm.slane %v925, 0
    %v929 = vmul.f32 %v797, %v927
    %v930 = vmul.f32 %v798, %v927
    %v931 = vmul.f32 %v799, %v927
    %v932 = vmul.f32 %v800, %v927
    %v933 = vmul.f32 %v801, %v927
    %v934 = vmul.f32 %v802, %v927
    %v935 = vmul.f32 %v803, %v927
    %v936 = vmul.f32 %v804, %v927
    %v937 = vmul.f32 %v805, %v927
    %v938 = vmul.f32 %v806, %v927
    %v939 = vmul.f32 %v807, %v927
    %v940 = vmul.f32 %v808, %v927
    %v941 = vmul.f32 %v809, %v927
    %v942 = vmul.f32 %v810, %v927
    %v943 = vmul.f32 %v811, %v927
    %v944 = vmul.f32 %v812, %v927
    %v945 = vmul.f32 %v813, %v927
    %v946 = vmul.f32 %v814, %v927
    %v947 = vmul.f32 %v815, %v927
    %v948 = vmul.f32 %v816, %v927
    %v949 = vmul.f32 %v817, %v927
    %v950 = vmul.f32 %v818, %v927
    %v951 = vmul.f32 %v819, %v927
    %v952 = vmul.f32 %v820, %v927
    %v953 = vmul.f32 %v821, %v927
    %v954 = vmul.f32 %v822, %v927
    %v955 = vmul.f32 %v823, %v927
    %v956 = vmul.f32 %v824, %v927
    %v957 = vmul.f32 %v825, %v927
    %v958 = vmul.f32 %v826, %v927
    %v959 = vmul.f32 %v827, %v927
    %v960 = vmul.f32 %v828, %v927
    %v961 = vmul.f32 %v829, %v927
    %v962 = vmul.f32 %v830, %v927
    %v963 = vmul.f32 %v831, %v927
    %v964 = vmul.f32 %v832, %v927
    %v965 = vmul.f32 %v833, %v927
    %v966 = vmul.f32 %v834, %v927
    %v967 = vmul.f32 %v835, %v927
    %v968 = vmul.f32 %v836, %v927
    %v969 = vmul.f32 %v837, %v927
    %v970 = vmul.f32 %v838, %v927
    %v971 = vmul.f32 %v839, %v927
    %v972 = vmul.f32 %v840, %v927
    %v973 = vmul.f32 %v841, %v927
    %v974 = vmul.f32 %v842, %v927
    %v975 = vmul.f32 %v843, %v927
    %v976 = vmul.f32 %v844, %v927
    %v977 = vmul.f32 %v845, %v927
    %v978 = vmul.f32 %v846, %v927
    %v979 = vmul.f32 %v847, %v927
    %v980 = vmul.f32 %v848, %v927
    %v981 = vmul.f32 %v849, %v927
    %v982 = vmul.f32 %v850, %v927
    %v983 = vmul.f32 %v851, %v927
    %v984 = vmul.f32 %v852, %v927
    %v985 = vmul.f32 %v853, %v927
    %v986 = vmul.f32 %v854, %v927
    %v987 = vmul.f32 %v855, %v927
    %v988 = vmul.f32 %v856, %v927
    %v989 = vmul.f32 %v857, %v927
    %v990 = vmul.f32 %v858, %v927
    %v991 = vmul.f32 %v859, %v927
    %v992 = vmul.f32 %v860, %v927
    %v993 = vmul.f32 %v861, %v927
    %v994 = vmul.f32 %v862, %v927
    %v995 = vmul.f32 %v863, %v927
    %v996 = vmul.f32 %v864, %v927
    %v997 = vmul.f32 %v865, %v927
    %v998 = vmul.f32 %v866, %v927
    %v999 = vmul.f32 %v867, %v927
    %v1000 = vmul.f32 %v868, %v927
    %v1001 = vmul.f32 %v869, %v927
    %v1002 = vmul.f32 %v870, %v927
    %v1003 = vmul.f32 %v871, %v927
    %v1004 = vmul.f32 %v872, %v927
    %v1005 = vmul.f32 %v873, %v927
    %v1006 = vmul.f32 %v874, %v927
    %v1007 = vmul.f32 %v875, %v927
    %v1008 = vmul.f32 %v876, %v927
    %v1009 = vmul.f32 %v877, %v927
    %v1010 = vmul.f32 %v878, %v927
    %v1011 = vmul.f32 %v879, %v927
    %v1012 = vmul.f32 %v880, %v927
    %v1013 = vmul.f32 %v881, %v927
    %v1014 = vmul.f32 %v882, %v927
    %v1015 = vmul.f32 %v883, %v927
    %v1016 = vmul.f32 %v884, %v927
    %v1017 = vmul.f32 %v885, %v927
    %v1018 = vmul.f32 %v886, %v927
    %v1019 = vmul.f32 %v887, %v927
    %v1020 = vmul.f32 %v888, %v927
    %v1021 = vmul.f32 %v889, %v927
    %v1022 = vmul.f32 %v890, %v927
    %v1023 = vmul.f32 %v891, %v927
    %v1024 = vmul.f32 %v892, %v927
    %v1025 = vmul.f32 %v893, %v927
    %v1026 = vmul.f32 %v894, %v927
    %v1027 = vmul.f32 %v895, %v927
    %v1028 = vmul.f32 %v896, %v927
    %v1029 = vmul.f32 %v897, %v927
    %v1030 = vmul.f32 %v898, %v927
    %v1031 = vmul.f32 %v899, %v927
    %v1032 = vmul.f32 %v900, %v927
    %v1033 = vmul.f32 %v901, %v927
    %v1034 = vmul.f32 %v902, %v927
    %v1035 = vmul.f32 %v903, %v927
    %v1036 = vmul.f32 %v904, %v927
    %v1037 = vmul.f32 %v905, %v927
    %v1038 = vmul.f32 %v906, %v927
    %v1039 = vmul.f32 %v907, %v927
    %v1040 = vmul.f32 %v908, %v927
    %v1041 = vmul.f32 %v909, %v927
    %v1042 = vmul.f32 %v910, %v927
    %v1043 = vmul.f32 %v911, %v927
    %v1044 = vmul.f32 %v912, %v927
    %v1045 = vmul.f32 %v913, %v927
    %v1046 = vmul.f32 %v914, %v927
    %v1047 = vmul.f32 %v915, %v927
    %v1048 = vmul.f32 %v916, %v927
    %v1049 = vmul.f32 %v917, %v927
    %v1050 = vmul.f32 %v918, %v927
    %v1051 = vmul.f32 %v919, %v927
    %v1052 = vmul.f32 %v920, %v927
    %v1053 = vmul.f32 %v921, %v927
    %v1054 = vmul.f32 %v922, %v927
    %v1055 = vmul.f32 %v923, %v927
    %v1056 = vmul.f32 %v924, %v927
    %1057 = vadd.xlane.f32.xlu0 %v929
    %v1058 = vpop.xlane.xlu0 %1057
    %1059 = vadd.xlane.f32.xlu0 %v930
    %v1060 = vpop.xlane.xlu0 %1059
    %1061 = vadd.xlane.f32.xlu0 %v931
    %v1062 = vpop.xlane.xlu0 %1061
    %1063 = vadd.xlane.f32.xlu0 %v932
    %v1064 = vpop.xlane.xlu0 %1063
    %1065 = vadd.xlane.f32.xlu0 %v933
    %v1066 = vpop.xlane.xlu0 %1065
    %1067 = vadd.xlane.f32.xlu0 %v934
    %v1068 = vpop.xlane.xlu0 %1067
    %1069 = vadd.xlane.f32.xlu0 %v935
    %v1070 = vpop.xlane.xlu0 %1069
    %1071 = vadd.xlane.f32.xlu0 %v936
    %v1072 = vpop.xlane.xlu0 %1071
    %1073 = vadd.xlane.f32.xlu0 %v937
    %v1074 = vpop.xlane.xlu0 %1073
    %1075 = vadd.xlane.f32.xlu0 %v938
    %v1076 = vpop.xlane.xlu0 %1075
    %1077 = vadd.xlane.f32.xlu0 %v939
    %v1078 = vpop.xlane.xlu0 %1077
    %1079 = vadd.xlane.f32.xlu0 %v940
    %v1080 = vpop.xlane.xlu0 %1079
    %1081 = vadd.xlane.f32.xlu0 %v941
    %v1082 = vpop.xlane.xlu0 %1081
    %1083 = vadd.xlane.f32.xlu0 %v942
    %v1084 = vpop.xlane.xlu0 %1083
    %1085 = vadd.xlane.f32.xlu0 %v943
    %v1086 = vpop.xlane.xlu0 %1085
    %1087 = vadd.xlane.f32.xlu0 %v944
    %v1088 = vpop.xlane.xlu0 %1087
    %1089 = vadd.xlane.f32.xlu0 %v945
    %v1090 = vpop.xlane.xlu0 %1089
    %1091 = vadd.xlane.f32.xlu0 %v946
    %v1092 = vpop.xlane.xlu0 %1091
    %1093 = vadd.xlane.f32.xlu0 %v947
    %v1094 = vpop.xlane.xlu0 %1093
    %1095 = vadd.xlane.f32.xlu0 %v948
    %v1096 = vpop.xlane.xlu0 %1095
    %1097 = vadd.xlane.f32.xlu0 %v949
    %v1098 = vpop.xlane.xlu0 %1097
    %1099 = vadd.xlane.f32.xlu0 %v950
    %v1100 = vpop.xlane.xlu0 %1099
    %1101 = vadd.xlane.f32.xlu0 %v951
    %v1102 = vpop.xlane.xlu0 %1101
    %1103 = vadd.xlane.f32.xlu0 %v952
    %v1104 = vpop.xlane.xlu0 %1103
    %1105 = vadd.xlane.f32.xlu0 %v953
    %v1106 = vpop.xlane.xlu0 %1105
    %1107 = vadd.xlane.f32.xlu0 %v954
    %v1108 = vpop.xlane.xlu0 %1107
    %1109 = vadd.xlane.f32.xlu0 %v955
    %v1110 = vpop.xlane.xlu0 %1109
    %1111 = vadd.xlane.f32.xlu0 %v956
    %v1112 = vpop.xlane.xlu0 %1111
    %1113 = vadd.xlane.f32.xlu0 %v957
    %v1114 = vpop.xlane.xlu0 %1113
    %1115 = vadd.xlane.f32.xlu0 %v958
    %v1116 = vpop.xlane.xlu0 %1115
    %1117 = vadd.xlane.f32.xlu0 %v959
    %v1118 = vpop.xlane.xlu0 %1117
    %1119 = vadd.xlane.f32.xlu0 %v960
    %v1120 = vpop.xlane.xlu0 %1119
    %1121 = vadd.xlane.f32.xlu0 %v961
    %v1122 = vpop.xlane.xlu0 %1121
    %1123 = vadd.xlane.f32.xlu0 %v962
    %v1124 = vpop.xlane.xlu0 %1123
    %1125 = vadd.xlane.f32.xlu0 %v963
    %v1126 = vpop.xlane.xlu0 %1125
    %1127 = vadd.xlane.f32.xlu0 %v964
    %v1128 = vpop.xlane.xlu0 %1127
    %1129 = vadd.xlane.f32.xlu0 %v965
    %v1130 = vpop.xlane.xlu0 %1129
    %1131 = vadd.xlane.f32.xlu0 %v966
    %v1132 = vpop.xlane.xlu0 %1131
    %1133 = vadd.xlane.f32.xlu0 %v967
    %v1134 = vpop.xlane.xlu0 %1133
    %1135 = vadd.xlane.f32.xlu0 %v968
    %v1136 = vpop.xlane.xlu0 %1135
    %1137 = vadd.xlane.f32.xlu0 %v969
    %v1138 = vpop.xlane.xlu0 %1137
    %1139 = vadd.xlane.f32.xlu0 %v970
    %v1140 = vpop.xlane.xlu0 %1139
    %1141 = vadd.xlane.f32.xlu0 %v971
    %v1142 = vpop.xlane.xlu0 %1141
    %1143 = vadd.xlane.f32.xlu0 %v972
    %v1144 = vpop.xlane.xlu0 %1143
    %1145 = vadd.xlane.f32.xlu0 %v973
    %v1146 = vpop.xlane.xlu0 %1145
    %1147 = vadd.xlane.f32.xlu0 %v974
    %v1148 = vpop.xlane.xlu0 %1147
    %1149 = vadd.xlane.f32.xlu0 %v975
    %v1150 = vpop.xlane.xlu0 %1149
    %1151 = vadd.xlane.f32.xlu0 %v976
    %v1152 = vpop.xlane.xlu0 %1151
    %1153 = vadd.xlane.f32.xlu0 %v977
    %v1154 = vpop.xlane.xlu0 %1153
    %1155 = vadd.xlane.f32.xlu0 %v978
    %v1156 = vpop.xlane.xlu0 %1155
    %1157 = vadd.xlane.f32.xlu0 %v979
    %v1158 = vpop.xlane.xlu0 %1157
    %1159 = vadd.xlane.f32.xlu0 %v980
    %v1160 = vpop.xlane.xlu0 %1159
    %1161 = vadd.xlane.f32.xlu0 %v981
    %v1162 = vpop.xlane.xlu0 %1161
    %1163 = vadd.xlane.f32.xlu0 %v982
    %v1164 = vpop.xlane.xlu0 %1163
    %1165 = vadd.xlane.f32.xlu0 %v983
    %v1166 = vpop.xlane.xlu0 %1165
    %1167 = vadd.xlane.f32.xlu0 %v984
    %v1168 = vpop.xlane.xlu0 %1167
    %1169 = vadd.xlane.f32.xlu0 %v985
    %v1170 = vpop.xlane.xlu0 %1169
    %1171 = vadd.xlane.f32.xlu0 %v986
    %v1172 = vpop.xlane.xlu0 %1171
    %1173 = vadd.xlane.f32.xlu0 %v987
    %v1174 = vpop.xlane.xlu0 %1173
    %1175 = vadd.xlane.f32.xlu0 %v988
    %v1176 = vpop.xlane.xlu0 %1175
    %1177 = vadd.xlane.f32.xlu0 %v989
    %v1178 = vpop.xlane.xlu0 %1177
    %1179 = vadd.xlane.f32.xlu0 %v990
    %v1180 = vpop.xlane.xlu0 %1179
    %1181 = vadd.xlane.f32.xlu0 %v991
    %v1182 = vpop.xlane.xlu0 %1181
    %1183 = vadd.xlane.f32.xlu0 %v992
    %v1184 = vpop.xlane.xlu0 %1183
    %1185 = vadd.xlane.f32.xlu0 %v993
    %v1186 = vpop.xlane.xlu0 %1185
    %1187 = vadd.xlane.f32.xlu0 %v994
    %v1188 = vpop.xlane.xlu0 %1187
    %1189 = vadd.xlane.f32.xlu0 %v995
    %v1190 = vpop.xlane.xlu0 %1189
    %1191 = vadd.xlane.f32.xlu0 %v996
    %v1192 = vpop.xlane.xlu0 %1191
    %1193 = vadd.xlane.f32.xlu0 %v997
    %v1194 = vpop.xlane.xlu0 %1193
    %1195 = vadd.xlane.f32.xlu0 %v998
    %v1196 = vpop.xlane.xlu0 %1195
    %1197 = vadd.xlane.f32.xlu0 %v999
    %v1198 = vpop.xlane.xlu0 %1197
    %1199 = vadd.xlane.f32.xlu0 %v1000
    %v1200 = vpop.xlane.xlu0 %1199
    %1201 = vadd.xlane.f32.xlu0 %v1001
    %v1202 = vpop.xlane.xlu0 %1201
    %1203 = vadd.xlane.f32.xlu0 %v1002
    %v1204 = vpop.xlane.xlu0 %1203
    %1205 = vadd.xlane.f32.xlu0 %v1003
    %v1206 = vpop.xlane.xlu0 %1205
    %1207 = vadd.xlane.f32.xlu0 %v1004
    %v1208 = vpop.xlane.xlu0 %1207
    %1209 = vadd.xlane.f32.xlu0 %v1005
    %v1210 = vpop.xlane.xlu0 %1209
    %1211 = vadd.xlane.f32.xlu0 %v1006
    %v1212 = vpop.xlane.xlu0 %1211
    %1213 = vadd.xlane.f32.xlu0 %v1007
    %v1214 = vpop.xlane.xlu0 %1213
    %1215 = vadd.xlane.f32.xlu0 %v1008
    %v1216 = vpop.xlane.xlu0 %1215
    %1217 = vadd.xlane.f32.xlu0 %v1009
    %v1218 = vpop.xlane.xlu0 %1217
    %1219 = vadd.xlane.f32.xlu0 %v1010
    %v1220 = vpop.xlane.xlu0 %1219
    %1221 = vadd.xlane.f32.xlu0 %v1011
    %v1222 = vpop.xlane.xlu0 %1221
    %1223 = vadd.xlane.f32.xlu0 %v1012
    %v1224 = vpop.xlane.xlu0 %1223
    %1225 = vadd.xlane.f32.xlu0 %v1013
    %v1226 = vpop.xlane.xlu0 %1225
    %1227 = vadd.xlane.f32.xlu0 %v1014
    %v1228 = vpop.xlane.xlu0 %1227
    %1229 = vadd.xlane.f32.xlu0 %v1015
    %v1230 = vpop.xlane.xlu0 %1229
    %1231 = vadd.xlane.f32.xlu0 %v1016
    %v1232 = vpop.xlane.xlu0 %1231
    %1233 = vadd.xlane.f32.xlu0 %v1017
    %v1234 = vpop.xlane.xlu0 %1233
    %1235 = vadd.xlane.f32.xlu0 %v1018
    %v1236 = vpop.xlane.xlu0 %1235
    %1237 = vadd.xlane.f32.xlu0 %v1019
    %v1238 = vpop.xlane.xlu0 %1237
    %1239 = vadd.xlane.f32.xlu0 %v1020
    %v1240 = vpop.xlane.xlu0 %1239
    %1241 = vadd.xlane.f32.xlu0 %v1021
    %v1242 = vpop.xlane.xlu0 %1241
    %1243 = vadd.xlane.f32.xlu0 %v1022
    %v1244 = vpop.xlane.xlu0 %1243
    %1245 = vadd.xlane.f32.xlu0 %v1023
    %v1246 = vpop.xlane.xlu0 %1245
    %1247 = vadd.xlane.f32.xlu0 %v1024
    %v1248 = vpop.xlane.xlu0 %1247
    %1249 = vadd.xlane.f32.xlu0 %v1025
    %v1250 = vpop.xlane.xlu0 %1249
    %1251 = vadd.xlane.f32.xlu0 %v1026
    %v1252 = vpop.xlane.xlu0 %1251
    %1253 = vadd.xlane.f32.xlu0 %v1027
    %v1254 = vpop.xlane.xlu0 %1253
    %1255 = vadd.xlane.f32.xlu0 %v1028
    %v1256 = vpop.xlane.xlu0 %1255
    %1257 = vadd.xlane.f32.xlu0 %v1029
    %v1258 = vpop.xlane.xlu0 %1257
    %1259 = vadd.xlane.f32.xlu0 %v1030
    %v1260 = vpop.xlane.xlu0 %1259
    %1261 = vadd.xlane.f32.xlu0 %v1031
    %v1262 = vpop.xlane.xlu0 %1261
    %1263 = vadd.xlane.f32.xlu0 %v1032
    %v1264 = vpop.xlane.xlu0 %1263
    %1265 = vadd.xlane.f32.xlu0 %v1033
    %v1266 = vpop.xlane.xlu0 %1265
    %1267 = vadd.xlane.f32.xlu0 %v1034
    %v1268 = vpop.xlane.xlu0 %1267
    %1269 = vadd.xlane.f32.xlu0 %v1035
    %v1270 = vpop.xlane.xlu0 %1269
    %1271 = vadd.xlane.f32.xlu0 %v1036
    %v1272 = vpop.xlane.xlu0 %1271
    %1273 = vadd.xlane.f32.xlu0 %v1037
    %v1274 = vpop.xlane.xlu0 %1273
    %1275 = vadd.xlane.f32.xlu0 %v1038
    %v1276 = vpop.xlane.xlu0 %1275
    %1277 = vadd.xlane.f32.xlu0 %v1039
    %v1278 = vpop.xlane.xlu0 %1277
    %1279 = vadd.xlane.f32.xlu0 %v1040
    %v1280 = vpop.xlane.xlu0 %1279
    %1281 = vadd.xlane.f32.xlu0 %v1041
    %v1282 = vpop.xlane.xlu0 %1281
    %1283 = vadd.xlane.f32.xlu0 %v1042
    %v1284 = vpop.xlane.xlu0 %1283
    %1285 = vadd.xlane.f32.xlu0 %v1043
    %v1286 = vpop.xlane.xlu0 %1285
    %1287 = vadd.xlane.f32.xlu0 %v1044
    %v1288 = vpop.xlane.xlu0 %1287
    %1289 = vadd.xlane.f32.xlu0 %v1045
    %v1290 = vpop.xlane.xlu0 %1289
    %1291 = vadd.xlane.f32.xlu0 %v1046
    %v1292 = vpop.xlane.xlu0 %1291
    %1293 = vadd.xlane.f32.xlu0 %v1047
    %v1294 = vpop.xlane.xlu0 %1293
    %1295 = vadd.xlane.f32.xlu0 %v1048
    %v1296 = vpop.xlane.xlu0 %1295
    %1297 = vadd.xlane.f32.xlu0 %v1049
    %v1298 = vpop.xlane.xlu0 %1297
    %1299 = vadd.xlane.f32.xlu0 %v1050
    %v1300 = vpop.xlane.xlu0 %1299
    %1301 = vadd.xlane.f32.xlu0 %v1051
    %v1302 = vpop.xlane.xlu0 %1301
    %1303 = vadd.xlane.f32.xlu0 %v1052
    %v1304 = vpop.xlane.xlu0 %1303
    %1305 = vadd.xlane.f32.xlu0 %v1053
    %v1306 = vpop.xlane.xlu0 %1305
    %1307 = vadd.xlane.f32.xlu0 %v1054
    %v1308 = vpop.xlane.xlu0 %1307
    %1309 = vadd.xlane.f32.xlu0 %v1055
    %v1310 = vpop.xlane.xlu0 %1309
    %1311 = vadd.xlane.f32.xlu0 %v1056
    %v1312 = vpop.xlane.xlu0 %1311
    %v1313 = vlaneseq
    %v1314 = vand.u32 %v1313, 127
    %vm1315 = vcmp.lt.s32.totalorder %v1314, 8
    %v1444 = vperm.slane %v1058, %v1314
    %v1445 = vadd.s32 %v1314, 4294967288
    %v1446 = vperm.slane %v1060, %v1445
    %vm1447 = vcmask 130112
    %v1448 = vsel %vm1447, %v1446, %v1444
    %v1449 = vadd.s32 %v1314, 4294967280
    %v1450 = vperm.slane %v1062, %v1449
    %vm1451 = vcmask 195712
    %v1452 = vsel %vm1451, %v1450, %v1448
    %v1453 = vadd.s32 %v1314, 4294967272
    %v1454 = vperm.slane %v1064, %v1453
    %vm1455 = vcmask 261312
    %v1456 = vsel %vm1455, %v1454, %v1452
    %v1457 = vadd.s32 %v1314, 4294967264
    %v1458 = vperm.slane %v1066, %v1457
    %vm1459 = vcmask 326912
    %v1460 = vsel %vm1459, %v1458, %v1456
    %v1461 = vadd.s32 %v1314, 4294967256
    %v1462 = vperm.slane %v1068, %v1461
    %vm1463 = vcmask 392512
    %v1464 = vsel %vm1463, %v1462, %v1460
    %v1465 = vadd.s32 %v1314, 4294967248
    %v1466 = vperm.slane %v1070, %v1465
    %vm1467 = vcmask 458112
    %v1468 = vsel %vm1467, %v1466, %v1464
    %v1469 = vadd.s32 %v1314, 4294967240
    %v1470 = vperm.slane %v1072, %v1469
    %vm1471 = vcmask 523712
    %v1472 = vsel %vm1471, %v1470, %v1468
    %v1473 = vadd.s32 %v1314, 4294967232
    %v1474 = vperm.slane %v1074, %v1473
    %vm1475 = vcmask 589312
    %v1476 = vsel %vm1475, %v1474, %v1472
    %v1477 = vadd.s32 %v1314, 4294967224
    %v1478 = vperm.slane %v1076, %v1477
    %vm1479 = vcmask 654912
    %v1480 = vsel %vm1479, %v1478, %v1476
    %v1481 = vadd.s32 %v1314, 4294967216
    %v1482 = vperm.slane %v1078, %v1481
    %vm1483 = vcmask 720512
    %v1484 = vsel %vm1483, %v1482, %v1480
    %v1485 = vadd.s32 %v1314, 4294967208
    %v1486 = vperm.slane %v1080, %v1485
    %vm1487 = vcmask 786112
    %v1488 = vsel %vm1487, %v1486, %v1484
    %v1489 = vadd.s32 %v1314, 4294967200
    %v1490 = vperm.slane %v1082, %v1489
    %vm1491 = vcmask 851712
    %v1492 = vsel %vm1491, %v1490, %v1488
    %v1493 = vadd.s32 %v1314, 4294967192
    %v1494 = vperm.slane %v1084, %v1493
    %vm1495 = vcmask 917312
    %v1496 = vsel %vm1495, %v1494, %v1492
    %v1497 = vadd.s32 %v1314, 4294967184
    %v1498 = vperm.slane %v1086, %v1497
    %vm1499 = vcmask 982912
    %v1500 = vsel %vm1499, %v1498, %v1496
    %v1501 = vadd.s32 %v1314, 4294967176
    %v1502 = vperm.slane %v1088, %v1501
    %vm1503 = vcmask 1048512
    %v1504 = vsel %vm1503, %v1502, %v1500
    %v1505 = vperm.slane %v1090, %v1314
    %v1506 = vperm.slane %v1092, %v1445
    %v1507 = vsel %vm1447, %v1506, %v1505
    %v1508 = vperm.slane %v1094, %v1449
    %v1509 = vsel %vm1451, %v1508, %v1507
    %v1510 = vperm.slane %v1096, %v1453
    %v1511 = vsel %vm1455, %v1510, %v1509
    %v1512 = vperm.slane %v1098, %v1457
    %v1513 = vsel %vm1459, %v1512, %v1511
    %v1514 = vperm.slane %v1100, %v1461
    %v1515 = vsel %vm1463, %v1514, %v1513
    %v1516 = vperm.slane %v1102, %v1465
    %v1517 = vsel %vm1467, %v1516, %v1515
    %v1518 = vperm.slane %v1104, %v1469
    %v1519 = vsel %vm1471, %v1518, %v1517
    %v1520 = vperm.slane %v1106, %v1473
    %v1521 = vsel %vm1475, %v1520, %v1519
    %v1522 = vperm.slane %v1108, %v1477
    %v1523 = vsel %vm1479, %v1522, %v1521
    %v1524 = vperm.slane %v1110, %v1481
    %v1525 = vsel %vm1483, %v1524, %v1523
    %v1526 = vperm.slane %v1112, %v1485
    %v1527 = vsel %vm1487, %v1526, %v1525
    %v1528 = vperm.slane %v1114, %v1489
    %v1529 = vsel %vm1491, %v1528, %v1527
    %v1530 = vperm.slane %v1116, %v1493
    %v1531 = vsel %vm1495, %v1530, %v1529
    %v1532 = vperm.slane %v1118, %v1497
    %v1533 = vsel %vm1499, %v1532, %v1531
    %v1534 = vperm.slane %v1120, %v1501
    %v1535 = vsel %vm1503, %v1534, %v1533
    %v1536 = vperm.slane %v1122, %v1314
    %v1537 = vperm.slane %v1124, %v1445
    %v1538 = vsel %vm1447, %v1537, %v1536
    %v1539 = vperm.slane %v1126, %v1449
    %v1540 = vsel %vm1451, %v1539, %v1538
    %v1541 = vperm.slane %v1128, %v1453
    %v1542 = vsel %vm1455, %v1541, %v1540
    %v1543 = vperm.slane %v1130, %v1457
    %v1544 = vsel %vm1459, %v1543, %v1542
    %v1545 = vperm.slane %v1132, %v1461
    %v1546 = vsel %vm1463, %v1545, %v1544
    %v1547 = vperm.slane %v1134, %v1465
    %v1548 = vsel %vm1467, %v1547, %v1546
    %v1549 = vperm.slane %v1136, %v1469
    %v1550 = vsel %vm1471, %v1549, %v1548
    %v1551 = vperm.slane %v1138, %v1473
    %v1552 = vsel %vm1475, %v1551, %v1550
    %v1553 = vperm.slane %v1140, %v1477
    %v1554 = vsel %vm1479, %v1553, %v1552
    %v1555 = vperm.slane %v1142, %v1481
    %v1556 = vsel %vm1483, %v1555, %v1554
    %v1557 = vperm.slane %v1144, %v1485
    %v1558 = vsel %vm1487, %v1557, %v1556
    %v1559 = vperm.slane %v1146, %v1489
    %v1560 = vsel %vm1491, %v1559, %v1558
    %v1561 = vperm.slane %v1148, %v1493
    %v1562 = vsel %vm1495, %v1561, %v1560
    %v1563 = vperm.slane %v1150, %v1497
    %v1564 = vsel %vm1499, %v1563, %v1562
    %v1565 = vperm.slane %v1152, %v1501
    %v1566 = vsel %vm1503, %v1565, %v1564
    %v1567 = vperm.slane %v1154, %v1314
    %v1568 = vperm.slane %v1156, %v1445
    %v1569 = vsel %vm1447, %v1568, %v1567
    %v1570 = vperm.slane %v1158, %v1449
    %v1571 = vsel %vm1451, %v1570, %v1569
    %v1572 = vperm.slane %v1160, %v1453
    %v1573 = vsel %vm1455, %v1572, %v1571
    %v1574 = vperm.slane %v1162, %v1457
    %v1575 = vsel %vm1459, %v1574, %v1573
    %v1576 = vperm.slane %v1164, %v1461
    %v1577 = vsel %vm1463, %v1576, %v1575
    %v1578 = vperm.slane %v1166, %v1465
    %v1579 = vsel %vm1467, %v1578, %v1577
    %v1580 = vperm.slane %v1168, %v1469
    %v1581 = vsel %vm1471, %v1580, %v1579
    %v1582 = vperm.slane %v1170, %v1473
    %v1583 = vsel %vm1475, %v1582, %v1581
    %v1584 = vperm.slane %v1172, %v1477
    %v1585 = vsel %vm1479, %v1584, %v1583
    %v1586 = vperm.slane %v1174, %v1481
    %v1587 = vsel %vm1483, %v1586, %v1585
    %v1588 = vperm.slane %v1176, %v1485
    %v1589 = vsel %vm1487, %v1588, %v1587
    %v1590 = vperm.slane %v1178, %v1489
    %v1591 = vsel %vm1491, %v1590, %v1589
    %v1592 = vperm.slane %v1180, %v1493
    %v1593 = vsel %vm1495, %v1592, %v1591
    %v1594 = vperm.slane %v1182, %v1497
    %v1595 = vsel %vm1499, %v1594, %v1593
    %v1596 = vperm.slane %v1184, %v1501
    %v1597 = vsel %vm1503, %v1596, %v1595
    %v1598 = vperm.slane %v1186, %v1314
    %v1599 = vperm.slane %v1188, %v1445
    %v1600 = vsel %vm1447, %v1599, %v1598
    %v1601 = vperm.slane %v1190, %v1449
    %v1602 = vsel %vm1451, %v1601, %v1600
    %v1603 = vperm.slane %v1192, %v1453
    %v1604 = vsel %vm1455, %v1603, %v1602
    %v1605 = vperm.slane %v1194, %v1457
    %v1606 = vsel %vm1459, %v1605, %v1604
    %v1607 = vperm.slane %v1196, %v1461
    %v1608 = vsel %vm1463, %v1607, %v1606
    %v1609 = vperm.slane %v1198, %v1465
    %v1610 = vsel %vm1467, %v1609, %v1608
    %v1611 = vperm.slane %v1200, %v1469
    %v1612 = vsel %vm1471, %v1611, %v1610
    %v1613 = vperm.slane %v1202, %v1473
    %v1614 = vsel %vm1475, %v1613, %v1612
    %v1615 = vperm.slane %v1204, %v1477
    %v1616 = vsel %vm1479, %v1615, %v1614
    %v1617 = vperm.slane %v1206, %v1481
    %v1618 = vsel %vm1483, %v1617, %v1616
    %v1619 = vperm.slane %v1208, %v1485
    %v1620 = vsel %vm1487, %v1619, %v1618
    %v1621 = vperm.slane %v1210, %v1489
    %v1622 = vsel %vm1491, %v1621, %v1620
    %v1623 = vperm.slane %v1212, %v1493
    %v1624 = vsel %vm1495, %v1623, %v1622
    %v1625 = vperm.slane %v1214, %v1497
    %v1626 = vsel %vm1499, %v1625, %v1624
    %v1627 = vperm.slane %v1216, %v1501
    %v1628 = vsel %vm1503, %v1627, %v1626
    %v1629 = vperm.slane %v1218, %v1314
    %v1630 = vperm.slane %v1220, %v1445
    %v1631 = vsel %vm1447, %v1630, %v1629
    %v1632 = vperm.slane %v1222, %v1449
    %v1633 = vsel %vm1451, %v1632, %v1631
    %v1634 = vperm.slane %v1224, %v1453
    %v1635 = vsel %vm1455, %v1634, %v1633
    %v1636 = vperm.slane %v1226, %v1457
    %v1637 = vsel %vm1459, %v1636, %v1635
    %v1638 = vperm.slane %v1228, %v1461
    %v1639 = vsel %vm1463, %v1638, %v1637
    %v1640 = vperm.slane %v1230, %v1465
    %v1641 = vsel %vm1467, %v1640, %v1639
    %v1642 = vperm.slane %v1232, %v1469
    %v1643 = vsel %vm1471, %v1642, %v1641
    %v1644 = vperm.slane %v1234, %v1473
    %v1645 = vsel %vm1475, %v1644, %v1643
    %v1646 = vperm.slane %v1236, %v1477
    %v1647 = vsel %vm1479, %v1646, %v1645
    %v1648 = vperm.slane %v1238, %v1481
    %v1649 = vsel %vm1483, %v1648, %v1647
    %v1650 = vperm.slane %v1240, %v1485
    %v1651 = vsel %vm1487, %v1650, %v1649
    %v1652 = vperm.slane %v1242, %v1489
    %v1653 = vsel %vm1491, %v1652, %v1651
    %v1654 = vperm.slane %v1244, %v1493
    %v1655 = vsel %vm1495, %v1654, %v1653
    %v1656 = vperm.slane %v1246, %v1497
    %v1657 = vsel %vm1499, %v1656, %v1655
    %v1658 = vperm.slane %v1248, %v1501
    %v1659 = vsel %vm1503, %v1658, %v1657
    %v1660 = vperm.slane %v1250, %v1314
    %v1661 = vperm.slane %v1252, %v1445
    %v1662 = vsel %vm1447, %v1661, %v1660
    %v1663 = vperm.slane %v1254, %v1449
    %v1664 = vsel %vm1451, %v1663, %v1662
    %v1665 = vperm.slane %v1256, %v1453
    %v1666 = vsel %vm1455, %v1665, %v1664
    %v1667 = vperm.slane %v1258, %v1457
    %v1668 = vsel %vm1459, %v1667, %v1666
    %v1669 = vperm.slane %v1260, %v1461
    %v1670 = vsel %vm1463, %v1669, %v1668
    %v1671 = vperm.slane %v1262, %v1465
    %v1672 = vsel %vm1467, %v1671, %v1670
    %v1673 = vperm.slane %v1264, %v1469
    %v1674 = vsel %vm1471, %v1673, %v1672
    %v1675 = vperm.slane %v1266, %v1473
    %v1676 = vsel %vm1475, %v1675, %v1674
    %v1677 = vperm.slane %v1268, %v1477
    %v1678 = vsel %vm1479, %v1677, %v1676
    %v1679 = vperm.slane %v1270, %v1481
    %v1680 = vsel %vm1483, %v1679, %v1678
    %v1681 = vperm.slane %v1272, %v1485
    %v1682 = vsel %vm1487, %v1681, %v1680
    %v1683 = vperm.slane %v1274, %v1489
    %v1684 = vsel %vm1491, %v1683, %v1682
    %v1685 = vperm.slane %v1276, %v1493
    %v1686 = vsel %vm1495, %v1685, %v1684
    %v1687 = vperm.slane %v1278, %v1497
    %v1688 = vsel %vm1499, %v1687, %v1686
    %v1689 = vperm.slane %v1280, %v1501
    %v1690 = vsel %vm1503, %v1689, %v1688
    %v1691 = vperm.slane %v1282, %v1314
    %v1692 = vperm.slane %v1284, %v1445
    %v1693 = vsel %vm1447, %v1692, %v1691
    %v1694 = vperm.slane %v1286, %v1449
    %v1695 = vsel %vm1451, %v1694, %v1693
    %v1696 = vperm.slane %v1288, %v1453
    %v1697 = vsel %vm1455, %v1696, %v1695
    %v1698 = vperm.slane %v1290, %v1457
    %v1699 = vsel %vm1459, %v1698, %v1697
    %v1700 = vperm.slane %v1292, %v1461
    %v1701 = vsel %vm1463, %v1700, %v1699
    %v1702 = vperm.slane %v1294, %v1465
    %v1703 = vsel %vm1467, %v1702, %v1701
    %v1704 = vperm.slane %v1296, %v1469
    %v1705 = vsel %vm1471, %v1704, %v1703
    %v1706 = vperm.slane %v1298, %v1473
    %v1707 = vsel %vm1475, %v1706, %v1705
    %v1708 = vperm.slane %v1300, %v1477
    %v1709 = vsel %vm1479, %v1708, %v1707
    %v1710 = vperm.slane %v1302, %v1481
    %v1711 = vsel %vm1483, %v1710, %v1709
    %v1712 = vperm.slane %v1304, %v1485
    %v1713 = vsel %vm1487, %v1712, %v1711
    %v1714 = vperm.slane %v1306, %v1489
    %v1715 = vsel %vm1491, %v1714, %v1713
    %v1716 = vperm.slane %v1308, %v1493
    %v1717 = vsel %vm1495, %v1716, %v1715
    %v1718 = vperm.slane %v1310, %v1497
    %v1719 = vsel %vm1499, %v1718, %v1717
    %v1720 = vperm.slane %v1312, %v1501
    %v1721 = vsel %vm1503, %v1720, %v1719
    %vm1722 = vcmask 1041409
    %v1723 = vsel %vm1722, %v1535, %v1504
    %vm1724 = vcmask 1042434
    %v1725 = vsel %vm1724, %v1566, %v1723
    %vm1726 = vcmask 1043459
    %v1727 = vsel %vm1726, %v1597, %v1725
    %vm1728 = vcmask 1044484
    %v1729 = vsel %vm1728, %v1628, %v1727
    %vm1730 = vcmask 1045509
    %v1731 = vsel %vm1730, %v1659, %v1729
    %vm1732 = vcmask 1046534
    %v1733 = vsel %vm1732, %v1690, %v1731
    %vm1734 = vcmask 1047559
    %v1735 = vsel %vm1734, %v1721, %v1733
    %v1737 = vsel %vm1315, %v1735, -inf
    %1738 = vmax.xlane.f32.xlu0 %v1737
    %v1739 = vpop.xlane.xlu0 %1738
    %v1740 = vsub.f32 %v1737, %v1739
    %v1741 = vmul.f32 %v1740, 1.442695
    %v1742 = vpow.pop %v1741
    %1743 = vadd.xlane.f32.xlu0 %v1742
    %v1744 = vpop.xlane.xlu0 %1743
    %v1745 = vrcp.pop %v1744
    %v1746 = vmul.f32 %v1744, %v1745
    %v1747 = vsub.f32 1.0, %v1746
    %v1748 = vmul.f32 %v1745, %v1747
    %v1749 = vadd.f32 %v1745, %v1748
    %vm1750 = vweird.f32 %v1744
    %vm1751 = vweird.f32 %v1745
    %vm1752 = vmor %vm1750, %vm1751
    %v1753 = vsel %vm1752, %v1745, %v1749
    %v1754 = vand.u32 2147483647, %v1744
    %vm1755 = vcmp.eq.f32.partialorder %v1754, 8.507059e+37
    %v1756 = vand.u32 %v1744, 2147483648
    %v1757 = vor.u32 1.1754944e-38, %v1756
    %v1758 = vsel %vm1755, %v1757, %v1753
    %v1759 = vmul.f32 %v1742, %v1758
    %1760 = vst [vmem:[#allocation8] sm:$0xff] %v1759
    // Predicated region
    $region30: #{tpu_custom_call.1} parent=1 // pred_check
      _
    $region31: #{tpu_custom_call.1} parent=1 // pred_check_branch
      %1762 = sbr.rel (0) target = $region33
    $region32: #{tpu_custom_call.1} parent=1 // pred_region
      %1764 = vsyncadd [#allocation4], 0
      %s1766 = sshll.u32 [#allocation8], 4
      %s1767 = int_to_ptr.vmem [resolvable:$true] %s1766
      %s1768 = sshll.u32 %s4, 4
      %s1769 = int_to_ptr.hbm [resolvable:$true] %s1768
      %1771 = dma.vmem_to_hbm [thread:$0]  %s1767, 128, %s1769, [#allocation4]
    $region33: #{tpu_custom_call.1} parent=1 // pred_fallthru
      _
    // Predicated region
    $region34: #{tpu_custom_call.1} parent=1 // pred_check
      _
    $region35: #{tpu_custom_call.1} parent=1 // pred_check_branch
      %1773 = sbr.rel (0) target = $region37
    $region36: #{tpu_custom_call.1} parent=1 // pred_region
      %1775 = dma.done [#allocation4], 128
    $region37: #{tpu_custom_call.1} parent=1 // pred_fallthru
      _
    %1776 = vsyncpa [#allocation3], 1
    %1777 = vsyncpa [#allocation6], 1
    %1778 = vsyncpa [#allocation4], 1

</llo_original>
